<compile_context>
chip_gen: v5e
topology: v5e:2x2
jax: 0.10.0
libtpu: 0.0.40
codegen_flags: <defaults>
</compile_context>

<pallas_src>
import functools

import jax
import jax.numpy as jnp
from jax import lax
from jax.experimental import pallas as pl
from jax.experimental.pallas import tpu as pltpu


def _round_up(n, m):
    return ((n + m - 1) // m) * m


# 3x3 taps in row-major (dy, dx) order -- matches w.reshape(Cout, 3, 3, Cin).
_TAPS = tuple((dy, dx) for dy in (-1, 0, 1) for dx in (-1, 0, 1))


def _make_tap_masks(H, W, imgs_per_tile):
    """Precompute (9, imgs_per_tile*H*W) bf16 0/1 border masks once.

    The masks zero out-of-image taps AND the cross-image bleed of the lane
    rolls (the lane tile is a whole number of images, so the per-image mask
    simply tiles periodically).
    """
    ys = jnp.arange(H, dtype=jnp.int32)[:, None]
    xs = jnp.arange(W, dtype=jnp.int32)[None, :]
    rows = []
    for dy, dx in _TAPS:
        valid = jnp.ones((H, W), dtype=bool)
        if dy == -1:
            valid = valid & (ys >= 1)
        elif dy == 1:
            valid = valid & (ys <= H - 2)
        if dx == -1:
            valid = valid & (xs >= 1)
        elif dx == 1:
            valid = valid & (xs <= W - 2)
        rows.append(valid.reshape(1, H * W))
    m = jnp.concatenate(rows, axis=0).astype(jnp.bfloat16)      # (9, H*W)
    return jnp.tile(m, (1, imgs_per_tile))                       # (9, T)


def _taps_3x3(a, masks, W):
    """im2col^T for a 3x3 'SAME' conv in planar (C, T) layout (T = imgs*H*W).

    a:     (C, T) f32 activations, flattened spatial axis on the lane axis.
    masks: (9, T) bf16 0/1 precomputed border masks.
    Returns (9*C, T) bf16, tap-major / channel-minor rows.
    Spatial shifts are XLU lane rolls; each piece is cast to bf16 *before* the
    concat so the big (9*C, T) intermediate and the matmul operand are bf16.
    """
    C, T = a.shape
    pieces = []
    for t, (dy, dx) in enumerate(_TAPS):
        s = dy * W + dx
        shifted = a if s == 0 else pltpu.roll(a, shift=(-s) % T, axis=1)
        piece = shifted.astype(jnp.bfloat16)
        if s != 0:  # center tap needs no mask (and must keep the bias channel)
            piece = piece * masks[t:t + 1, :]
        pieces.append(piece)
    # Each piece has a multiple-of-16 row count -> aligned bf16 packing.
    return jnp.concatenate(pieces, axis=0)


def _sr_fused_kernel(x_ref, mask_ref, w1_ref, w2_ref, b2_ref, o_ref, *, W):
    """Fused conv1 -> ReLU -> conv2 for one lane tile of pixels."""
    masks = mask_ref[...]                                    # (9, T) bf16
    x = x_ref[...].astype(jnp.float32)                       # (cin_p, T)

    # conv1: single MXU matmul, K = 9*cin_p, bf16 operands, f32 accumulation.
    # b1 is folded into w1 via the constant-1 bias channel in the padding.
    x_col = _taps_3x3(x, masks, W)                           # (9*cin_p, T) bf16
    h = jnp.dot(w1_ref[...], x_col, preferred_element_type=jnp.float32)
    h = jnp.maximum(h, 0.0)                                  # (hid, T) f32

    # conv2: single MXU matmul, K = 9*hid.
    h_col = _taps_3x3(h, masks, W)                           # (9*hid, T) bf16
    y = jnp.dot(w2_ref[...], h_col, preferred_element_type=jnp.float32)

    # Lane-dense store: last dim is a multiple of 128 -> unmasked vst.
    o_ref[...] = (y + b2_ref[...]).astype(o_ref.dtype)


def _vmem_limit_bytes():
    """Scoped-VMEM limit ~7/8 of physical (>= the 16/32 MiB defaults)."""
    cap = None
    try:
        cap = getattr(pltpu.get_tpu_info(), "vmem_capacity_bytes", None)
    except Exception:
        cap = None
    if not cap:
        cap = 64 << 20            # conservative (v7x-sized) fallback
    return int(cap) * 7 // 8


def sr_head_pallas(x_nchw, w1, b1, w2, b2, *, upscale):
    """ESPCN-style SR head.  x_nchw: (B, Cin, H, W) float32.

    w1: (3,3,Cin,HID)   b1: (HID,)
    w2: (3,3,HID,Cin*r*r)   b2: (Cin*r*r,)
    Returns (B, Cin, H*r, W*r), matching torch PixelShuffle semantics.
    """
    B, Cin, H, W = x_nchw.shape
    assert H >= 2 and W >= 2, "3x3 SAME taps assume H, W >= 2"
    hid = w1.shape[3]
    Cout = w2.shape[3]
    r = upscale
    assert Cout == Cin * r * r
    assert hid % 16 == 0, "hid must be a multiple of 16 (bf16 sublane packing)"
    HW = H * W
    assert HW % 128 == 0, "flattened image must fill whole lane tiles"
    # Channels padded to a bf16 sublane tile (16); at least one spare row is
    # reserved as the constant-1 "bias channel" used to fold b1 into w1.
    cin_p = _round_up(Cin + 1, 16)

    # ---- planar (C, B*HW) activations, bf16 in HBM (halves input DMA) ------
    x = jnp.transpose(x_nchw.reshape(B, Cin, HW), (1, 0, 2)).reshape(Cin, B * HW)
    bias_row = jnp.ones((1, B * HW), x.dtype)
    zero_rows = jnp.zeros((cin_p - Cin - 1, B * HW), x.dtype)
    x = jnp.concatenate([x, bias_row, zero_rows], axis=0).astype(jnp.bfloat16)

    # ---- weights as matmul matrices (tap-major, channel-minor), bf16 -------
    w1_k = jnp.transpose(w1, (3, 0, 1, 2))                        # (hid,3,3,Cin)
    w1_k = jnp.pad(w1_k, ((0, 0), (0, 0), (0, 0), (0, cin_p - Cin)))
    w1_k = w1_k.at[:, 1, 1, Cin].set(b1)          # fold b1: center tap x bias channel
    w1_k = w1_k.reshape(hid, 9 * cin_p).astype(jnp.bfloat16)
    w2_k = jnp.transpose(w2, (3, 0, 1, 2)).reshape(Cout, 9 * hid)
    w2_k = w2_k.astype(jnp.bfloat16)
    b2_k = b2.reshape(Cout, 1).astype(jnp.float32)

    # ---- lane tiling: whole images per grid step ----------------------------
    # Rough per-pixel VMEM: x + x_col + h + h_col + y + double-buffered blocks.
    bytes_per_px = (2 * cin_p + 2 * 9 * cin_p + 4 * hid + 2 * 9 * hid
                    + 4 * Cout + 2 * (2 * cin_p + 4 * Cout))
    budget = 24 << 20            # keeps the step well inside v7x's 64 MiB VMEM
    imgs_per_tile = 1
    for d in range(1, B + 1):
        if B % d == 0 and d * HW * bytes_per_px <= budget and d * HW <= 32768:
            imgs_per_tile = d
    tile_lanes = imgs_per_tile * HW
    n_tiles = B // imgs_per_tile

    masks = _make_tap_masks(H, W, imgs_per_tile)                  # (9, tile_lanes)

    flops = 2 * (9 * cin_p * hid + 9 * hid * Cout) * B * HW
    bytes_accessed = (x.size * 2 + Cout * B * HW * 4
                      + w1_k.size * 2 + w2_k.size * 2 + b2_k.size * 4
                      + masks.size * 2)

    kernel = functools.partial(_sr_fused_kernel, W=W)

    out = pl.pallas_call(
        kernel,
        out_shape=jax.ShapeDtypeStruct((Cout, B * HW), jnp.float32),
        grid_spec=pltpu.PrefetchScalarGridSpec(
            num_scalar_prefetch=0,
            grid=(n_tiles,),
            in_specs=[
                pl.BlockSpec((cin_p, tile_lanes), lambda t: (0, t)),
                pl.BlockSpec((9, tile_lanes), lambda t: (0, 0)),
                pl.BlockSpec((hid, 9 * cin_p), lambda t: (0, 0)),
                pl.BlockSpec((Cout, 9 * hid), lambda t: (0, 0)),
                pl.BlockSpec((Cout, 1), lambda t: (0, 0)),
            ],
            out_specs=pl.BlockSpec((Cout, tile_lanes), lambda t: (0, t)),
        ),
        compiler_params=pltpu.CompilerParams(
            dimension_semantics=("parallel",),
            vmem_limit_bytes=_vmem_limit_bytes()),
        cost_estimate=pl.CostEstimate(
            flops=int(flops), transcendentals=0,
            bytes_accessed=int(bytes_accessed)),
    )(x, masks, w1_k, w2_k, b2_k)

    # PixelShuffle(r) (torch order: channel = c*r*r + i*r + j).
    # out[cin*r*r + i*r + j, b*HW + h*W + w] -> hr[b, cin, h*r+i, w*r+j]
    y = out.reshape(Cin, r, r, B, H, W)
    y = jnp.transpose(y, (3, 0, 4, 1, 5, 2))                      # (B,Cin,H,r,W,r)
    return y.reshape(B, Cin, H * r, W * r)


def fast_sr_nerf_forward(rays, lr_images, params, *, upscale):
    """FastSRNeRF.forward: NeRF branch is unused; returns sr(lr_images)."""
    del rays  # matches the PyTorch module: rays / nerf are not used in forward
    w1, b1, w2, b2 = params
    return sr_head_pallas(lr_images, w1, b1, w2, b2, upscale=upscale)


def _sr_head_reference(x_nchw, w1, b1, w2, b2, *, upscale):
    """Pure-JAX reference (lax.conv, f32) for validation."""
    B, Cin, H, W = x_nchw.shape
    r = upscale
    x = jnp.transpose(x_nchw, (0, 2, 3, 1))
    dn = lax.conv_dimension_numbers(x.shape, w1.shape, ("NHWC", "HWIO", "NHWC"))
    h = lax.conv_general_dilated(x, w1, (1, 1), "SAME", dimension_numbers=dn)
    h = jnp.maximum(h + b1, 0.0)
    y = lax.conv_general_dilated(h, w2, (1, 1), "SAME", dimension_numbers=dn)
    y = y + b2
    y = jnp.transpose(y, (0, 3, 1, 2))
    y = y.reshape(B, Cin, r, r, H, W)
    y = jnp.transpose(y, (0, 1, 4, 2, 5, 3))
    return y.reshape(B, Cin, H * r, W * r)


if __name__ == "__main__":
    B, Cin, H, W = 2, 4, 16, 16
    HID = 32
    R = 2  # upscale factor
    Cout = Cin * R * R

    key = jax.random.PRNGKey(0)
    k_rays, k_img, k_w1, k_b1, k_w2, k_b2 = jax.random.split(key, 6)

    # Deterministic synthetic parameters (HWIO layout).
    w1 = 0.1 * jax.random.normal(k_w1, (3, 3, Cin, HID), jnp.float32)
    b1 = 0.1 * jax.random.normal(k_b1, (HID,), jnp.float32)
    w2 = 0.1 * jax.random.normal(k_w2, (3, 3, HID, Cout), jnp.float32)
    b2 = 0.1 * jax.random.normal(k_b2, (Cout,), jnp.float32)
    params = (w1, b1, w2, b2)

    # Inputs: `rays` is unused by forward (kept for signature fidelity).
    rays = jax.random.normal(k_rays, (B, 8, 6), jnp.float32)
    lr_images = jax.random.normal(k_img, (B, Cin, H, W), jnp.float32)  # NCHW

    hr_images = fast_sr_nerf_forward(rays, lr_images, params, upscale=R)
    hr_images = jax.block_until_ready(hr_images)

    ref = _sr_head_reference(lr_images, w1, b1, w2, b2, upscale=R)
    assert hr_images.shape == (B, Cin, H * R, W * R)
    err = float(jnp.max(jnp.abs(hr_images - ref)))
    assert err < 5e-2, f"max abs error {err}"  # bf16 matmul operands, f32 acc

    print("KERNEL_OK")
</pallas_src>

<mosaic_0001>
module attributes {stable_mosaic.version = 11 : i64} {
  func.func @_sr_fused_kernel(%arg0: i32, %arg1: memref<16x512xbf16, #tpu.memory_space<vmem>>, %arg2: memref<9x512xbf16, #tpu.memory_space<vmem>>, %arg3: memref<32x144xbf16, #tpu.memory_space<vmem>>, %arg4: memref<16x288xbf16, #tpu.memory_space<vmem>>, %arg5: memref<16x1xf32, #tpu.memory_space<vmem>>, %arg6: memref<16x512xf32, #tpu.memory_space<vmem>>) attributes {dimension_semantics = [#tpu.dimension_semantics<parallel>], iteration_bounds = array<i64: 1>, scalar_prefetch = 0 : i64, scratch_operands = 0 : i64, tpu.core_type = #tpu.core_type<tc>, window_params = [{transform_indices = @transform_0, window_bounds = array<i64: 16, 512>}, {pipeline_mode = #tpu.pipeline_mode<synchronous>, transform_indices = @transform_1, window_bounds = array<i64: 9, 512>}, {pipeline_mode = #tpu.pipeline_mode<synchronous>, transform_indices = @transform_2, window_bounds = array<i64: 32, 144>}, {pipeline_mode = #tpu.pipeline_mode<synchronous>, transform_indices = @transform_3, window_bounds = array<i64: 16, 288>}, {pipeline_mode = #tpu.pipeline_mode<synchronous>, transform_indices = @transform_4, window_bounds = array<i64: 16, 1>}, {transform_indices = @transform_5, window_bounds = array<i64: 16, 512>}]} {
    %c0 = arith.constant 0 : index
    %c0_0 = arith.constant 0 : index
    %0 = vector.load %arg2[%c0, %c0_0] : memref<9x512xbf16, #tpu.memory_space<vmem>>, vector<9x512xbf16>
    %c0_1 = arith.constant 0 : index
    %c0_2 = arith.constant 0 : index
    %1 = vector.load %arg1[%c0_1, %c0_2] : memref<16x512xbf16, #tpu.memory_space<vmem>>, vector<16x512xbf16>
    %2 = arith.extf %1 : vector<16x512xbf16> to vector<16x512xf32>
    %c17_i32 = arith.constant 17 : i32
    %3 = tpu.dynamic_rotate %2 by %c17_i32 dim 1 : vector<16x512xf32>, i32 -> vector<16x512xf32>
    %4 = arith.truncf %3 : vector<16x512xf32> to vector<16x512xbf16>
    %5 = vector.extract_strided_slice %0 {offsets = [0, 0], sizes = [1, 512], strides = [1, 1]} : vector<9x512xbf16> to vector<1x512xbf16>
    %6 = vector.broadcast %5 : vector<1x512xbf16> to vector<16x512xbf16>
    %7 = arith.mulf %4, %6 : vector<16x512xbf16>
    %c16_i32 = arith.constant 16 : i32
    %8 = tpu.dynamic_rotate %2 by %c16_i32 dim 1 : vector<16x512xf32>, i32 -> vector<16x512xf32>
    %9 = arith.truncf %8 : vector<16x512xf32> to vector<16x512xbf16>
    %10 = vector.extract_strided_slice %0 {offsets = [1, 0], sizes = [1, 512], strides = [1, 1]} : vector<9x512xbf16> to vector<1x512xbf16>
    %11 = vector.broadcast %10 : vector<1x512xbf16> to vector<16x512xbf16>
    %12 = arith.mulf %9, %11 : vector<16x512xbf16>
    %c15_i32 = arith.constant 15 : i32
    %13 = tpu.dynamic_rotate %2 by %c15_i32 dim 1 : vector<16x512xf32>, i32 -> vector<16x512xf32>
    %14 = arith.truncf %13 : vector<16x512xf32> to vector<16x512xbf16>
    %15 = vector.extract_strided_slice %0 {offsets = [2, 0], sizes = [1, 512], strides = [1, 1]} : vector<9x512xbf16> to vector<1x512xbf16>
    %16 = vector.broadcast %15 : vector<1x512xbf16> to vector<16x512xbf16>
    %17 = arith.mulf %14, %16 : vector<16x512xbf16>
    %c1_i32 = arith.constant 1 : i32
    %18 = tpu.dynamic_rotate %2 by %c1_i32 dim 1 : vector<16x512xf32>, i32 -> vector<16x512xf32>
    %19 = arith.truncf %18 : vector<16x512xf32> to vector<16x512xbf16>
    %20 = vector.extract_strided_slice %0 {offsets = [3, 0], sizes = [1, 512], strides = [1, 1]} : vector<9x512xbf16> to vector<1x512xbf16>
    %21 = vector.broadcast %20 : vector<1x512xbf16> to vector<16x512xbf16>
    %22 = arith.mulf %19, %21 : vector<16x512xbf16>
    %23 = arith.truncf %2 : vector<16x512xf32> to vector<16x512xbf16>
    %c511_i32 = arith.constant 511 : i32
    %24 = tpu.dynamic_rotate %2 by %c511_i32 dim 1 : vector<16x512xf32>, i32 -> vector<16x512xf32>
    %25 = arith.truncf %24 : vector<16x512xf32> to vector<16x512xbf16>
    %26 = vector.extract_strided_slice %0 {offsets = [5, 0], sizes = [1, 512], strides = [1, 1]} : vector<9x512xbf16> to vector<1x512xbf16>
    %27 = vector.broadcast %26 : vector<1x512xbf16> to vector<16x512xbf16>
    %28 = arith.mulf %25, %27 : vector<16x512xbf16>
    %c497_i32 = arith.constant 497 : i32
    %29 = tpu.dynamic_rotate %2 by %c497_i32 dim 1 : vector<16x512xf32>, i32 -> vector<16x512xf32>
    %30 = arith.truncf %29 : vector<16x512xf32> to vector<16x512xbf16>
    %31 = vector.extract_strided_slice %0 {offsets = [6, 0], sizes = [1, 512], strides = [1, 1]} : vector<9x512xbf16> to vector<1x512xbf16>
    %32 = vector.broadcast %31 : vector<1x512xbf16> to vector<16x512xbf16>
    %33 = arith.mulf %30, %32 : vector<16x512xbf16>
    %c496_i32 = arith.constant 496 : i32
    %34 = tpu.dynamic_rotate %2 by %c496_i32 dim 1 : vector<16x512xf32>, i32 -> vector<16x512xf32>
    %35 = arith.truncf %34 : vector<16x512xf32> to vector<16x512xbf16>
    %36 = vector.extract_strided_slice %0 {offsets = [7, 0], sizes = [1, 512], strides = [1, 1]} : vector<9x512xbf16> to vector<1x512xbf16>
    %37 = vector.broadcast %36 : vector<1x512xbf16> to vector<16x512xbf16>
    %38 = arith.mulf %35, %37 : vector<16x512xbf16>
    %c495_i32 = arith.constant 495 : i32
    %39 = tpu.dynamic_rotate %2 by %c495_i32 dim 1 : vector<16x512xf32>, i32 -> vector<16x512xf32>
    %40 = arith.truncf %39 : vector<16x512xf32> to vector<16x512xbf16>
    %41 = vector.extract_strided_slice %0 {offsets = [8, 0], sizes = [1, 512], strides = [1, 1]} : vector<9x512xbf16> to vector<1x512xbf16>
    %42 = vector.broadcast %41 : vector<1x512xbf16> to vector<16x512xbf16>
    %43 = arith.mulf %40, %42 : vector<16x512xbf16>
    %44 = tpu.concatenate %7, %12, %17, %22, %23, %28, %33, %38, %43 in 0 : vector<16x512xbf16>, vector<16x512xbf16>, vector<16x512xbf16>, vector<16x512xbf16>, vector<16x512xbf16>, vector<16x512xbf16>, vector<16x512xbf16>, vector<16x512xbf16>, vector<16x512xbf16> -> vector<144x512xbf16>
    %c0_3 = arith.constant 0 : index
    %c0_4 = arith.constant 0 : index
    %45 = vector.load %arg3[%c0_3, %c0_4] : memref<32x144xbf16, #tpu.memory_space<vmem>>, vector<32x144xbf16>
    %cst = arith.constant dense<0.000000e+00> : vector<32x512xf32>
    %46 = tpu.matmul %45, %44, %cst {dimension_numbers = #tpu.dot_dimension_numbers<[1], [0], [0], [1], [0, 0, 1, 1], [], []>} : vector<32x144xbf16>, vector<144x512xbf16>, vector<32x512xf32> -> vector<32x512xf32>
    %cst_5 = arith.constant 0.000000e+00 : f32
    %47 = vector.broadcast %cst_5 : f32 to vector<32x512xf32>
    %48 = arith.maximumf %46, %47 : vector<32x512xf32>
    %c17_i32_6 = arith.constant 17 : i32
    %49 = tpu.dynamic_rotate %48 by %c17_i32_6 dim 1 : vector<32x512xf32>, i32 -> vector<32x512xf32>
    %50 = arith.truncf %49 : vector<32x512xf32> to vector<32x512xbf16>
    %51 = vector.extract_strided_slice %0 {offsets = [0, 0], sizes = [1, 512], strides = [1, 1]} : vector<9x512xbf16> to vector<1x512xbf16>
    %52 = vector.broadcast %51 : vector<1x512xbf16> to vector<32x512xbf16>
    %53 = arith.mulf %50, %52 : vector<32x512xbf16>
    %c16_i32_7 = arith.constant 16 : i32
    %54 = tpu.dynamic_rotate %48 by %c16_i32_7 dim 1 : vector<32x512xf32>, i32 -> vector<32x512xf32>
    %55 = arith.truncf %54 : vector<32x512xf32> to vector<32x512xbf16>
    %56 = vector.extract_strided_slice %0 {offsets = [1, 0], sizes = [1, 512], strides = [1, 1]} : vector<9x512xbf16> to vector<1x512xbf16>
    %57 = vector.broadcast %56 : vector<1x512xbf16> to vector<32x512xbf16>
    %58 = arith.mulf %55, %57 : vector<32x512xbf16>
    %c15_i32_8 = arith.constant 15 : i32
    %59 = tpu.dynamic_rotate %48 by %c15_i32_8 dim 1 : vector<32x512xf32>, i32 -> vector<32x512xf32>
    %60 = arith.truncf %59 : vector<32x512xf32> to vector<32x512xbf16>
    %61 = vector.extract_strided_slice %0 {offsets = [2, 0], sizes = [1, 512], strides = [1, 1]} : vector<9x512xbf16> to vector<1x512xbf16>
    %62 = vector.broadcast %61 : vector<1x512xbf16> to vector<32x512xbf16>
    %63 = arith.mulf %60, %62 : vector<32x512xbf16>
    %c1_i32_9 = arith.constant 1 : i32
    %64 = tpu.dynamic_rotate %48 by %c1_i32_9 dim 1 : vector<32x512xf32>, i32 -> vector<32x512xf32>
    %65 = arith.truncf %64 : vector<32x512xf32> to vector<32x512xbf16>
    %66 = vector.extract_strided_slice %0 {offsets = [3, 0], sizes = [1, 512], strides = [1, 1]} : vector<9x512xbf16> to vector<1x512xbf16>
    %67 = vector.broadcast %66 : vector<1x512xbf16> to vector<32x512xbf16>
    %68 = arith.mulf %65, %67 : vector<32x512xbf16>
    %69 = arith.truncf %48 : vector<32x512xf32> to vector<32x512xbf16>
    %c511_i32_10 = arith.constant 511 : i32
    %70 = tpu.dynamic_rotate %48 by %c511_i32_10 dim 1 : vector<32x512xf32>, i32 -> vector<32x512xf32>
    %71 = arith.truncf %70 : vector<32x512xf32> to vector<32x512xbf16>
    %72 = vector.extract_strided_slice %0 {offsets = [5, 0], sizes = [1, 512], strides = [1, 1]} : vector<9x512xbf16> to vector<1x512xbf16>
    %73 = vector.broadcast %72 : vector<1x512xbf16> to vector<32x512xbf16>
    %74 = arith.mulf %71, %73 : vector<32x512xbf16>
    %c497_i32_11 = arith.constant 497 : i32
    %75 = tpu.dynamic_rotate %48 by %c497_i32_11 dim 1 : vector<32x512xf32>, i32 -> vector<32x512xf32>
    %76 = arith.truncf %75 : vector<32x512xf32> to vector<32x512xbf16>
    %77 = vector.extract_strided_slice %0 {offsets = [6, 0], sizes = [1, 512], strides = [1, 1]} : vector<9x512xbf16> to vector<1x512xbf16>
    %78 = vector.broadcast %77 : vector<1x512xbf16> to vector<32x512xbf16>
    %79 = arith.mulf %76, %78 : vector<32x512xbf16>
    %c496_i32_12 = arith.constant 496 : i32
    %80 = tpu.dynamic_rotate %48 by %c496_i32_12 dim 1 : vector<32x512xf32>, i32 -> vector<32x512xf32>
    %81 = arith.truncf %80 : vector<32x512xf32> to vector<32x512xbf16>
    %82 = vector.extract_strided_slice %0 {offsets = [7, 0], sizes = [1, 512], strides = [1, 1]} : vector<9x512xbf16> to vector<1x512xbf16>
    %83 = vector.broadcast %82 : vector<1x512xbf16> to vector<32x512xbf16>
    %84 = arith.mulf %81, %83 : vector<32x512xbf16>
    %c495_i32_13 = arith.constant 495 : i32
    %85 = tpu.dynamic_rotate %48 by %c495_i32_13 dim 1 : vector<32x512xf32>, i32 -> vector<32x512xf32>
    %86 = arith.truncf %85 : vector<32x512xf32> to vector<32x512xbf16>
    %87 = vector.extract_strided_slice %0 {offsets = [8, 0], sizes = [1, 512], strides = [1, 1]} : vector<9x512xbf16> to vector<1x512xbf16>
    %88 = vector.broadcast %87 : vector<1x512xbf16> to vector<32x512xbf16>
    %89 = arith.mulf %86, %88 : vector<32x512xbf16>
    %90 = tpu.concatenate %53, %58, %63, %68, %69, %74, %79, %84, %89 in 0 : vector<32x512xbf16>, vector<32x512xbf16>, vector<32x512xbf16>, vector<32x512xbf16>, vector<32x512xbf16>, vector<32x512xbf16>, vector<32x512xbf16>, vector<32x512xbf16>, vector<32x512xbf16> -> vector<288x512xbf16>
    %c0_14 = arith.constant 0 : index
    %c0_15 = arith.constant 0 : index
    %91 = vector.load %arg4[%c0_14, %c0_15] : memref<16x288xbf16, #tpu.memory_space<vmem>>, vector<16x288xbf16>
    %cst_16 = arith.constant dense<0.000000e+00> : vector<16x512xf32>
    %92 = tpu.matmul %91, %90, %cst_16 {dimension_numbers = #tpu.dot_dimension_numbers<[1], [0], [0], [1], [0, 0, 1, 1], [], []>} : vector<16x288xbf16>, vector<288x512xbf16>, vector<16x512xf32> -> vector<16x512xf32>
    %c0_17 = arith.constant 0 : index
    %c0_18 = arith.constant 0 : index
    %93 = vector.load %arg5[%c0_17, %c0_18] : memref<16x1xf32, #tpu.memory_space<vmem>>, vector<16x1xf32>
    %94 = vector.broadcast %93 : vector<16x1xf32> to vector<16x512xf32>
    %95 = arith.addf %92, %94 : vector<16x512xf32>
    %c0_19 = arith.constant 0 : index
    %c0_20 = arith.constant 0 : index
    %96 = vector.load %arg6[%c0_19, %c0_20] : memref<16x512xf32, #tpu.memory_space<vmem>>, vector<16x512xf32>
    tpu.vector_store %arg6[%c0_19, %c0_20], %95 {strides = array<i32>} : memref<16x512xf32, #tpu.memory_space<vmem>>, vector<16x512xf32>,
    return
  }
  func.func @transform_0(%arg0: i32) -> (i32, i32) {
    %c0_i32 = arith.constant 0 : i32
    %c0_i32_0 = arith.constant 0 : i32
    return %c0_i32, %arg0 : i32, i32
  }
  func.func @transform_1(%arg0: i32) -> (i32, i32) {
    %c0_i32 = arith.constant 0 : i32
    %c0_i32_0 = arith.constant 0 : i32
    %c0_i32_1 = arith.constant 0 : i32
    return %c0_i32, %c0_i32_0 : i32, i32
  }
  func.func @transform_2(%arg0: i32) -> (i32, i32) {
    %c0_i32 = arith.constant 0 : i32
    %c0_i32_0 = arith.constant 0 : i32
    %c0_i32_1 = arith.constant 0 : i32
    return %c0_i32, %c0_i32_0 : i32, i32
  }
  func.func @transform_3(%arg0: i32) -> (i32, i32) {
    %c0_i32 = arith.constant 0 : i32
    %c0_i32_0 = arith.constant 0 : i32
    %c0_i32_1 = arith.constant 0 : i32
    return %c0_i32, %c0_i32_0 : i32, i32
  }
  func.func @transform_4(%arg0: i32) -> (i32, i32) {
    %c0_i32 = arith.constant 0 : i32
    %c0_i32_0 = arith.constant 0 : i32
    %c0_i32_1 = arith.constant 0 : i32
    return %c0_i32, %c0_i32_0 : i32, i32
  }
  func.func @transform_5(%arg0: i32) -> (i32, i32) {
    %c0_i32 = arith.constant 0 : i32
    %c0_i32_0 = arith.constant 0 : i32
    return %c0_i32, %arg0 : i32, i32
  }
}

</mosaic_0001>

<llo_original>
// kernel: tpu_custom_call.1
$region0: #{tpu_custom_call.1}
  #allocation0 [shape = 'u32[]', space=smem, size = 0x4, offset = 0x4, fixed_abs, tag = 'smem constant byte address 0x4 - core index']
  #allocation1 [shape = 'u32[72,128]{1,0:T(1,128)}', space=vmem, size = 0x9000, scoped, tag = 'internal scratch']
  %s0 = inlined_call_operand.hbm [shape: bf16[16,512], index: 0, kind: input, shape index: {}]
  %s1 = inlined_call_operand.hbm [shape: bf16[9,512], index: 1, kind: input, shape index: {}]
  %s2 = inlined_call_operand.hbm [shape: bf16[32,144], index: 2, kind: input, shape index: {}]
  %s3 = inlined_call_operand.hbm [shape: bf16[16,288], index: 3, kind: input, shape index: {}]
  %s4 = inlined_call_operand.vmem [shape: f32[16,1], index: 4, kind: input, shape index: {}]
  %s5 = inlined_call_operand.hbm [shape: f32[16,512], index: 5, kind: output, shape index: {}]
  %s6 = sld [smem:[#allocation0]]
  $region46: #{tpu_custom_call.1} parent=0
    _
  %s8 = ssub.s32 1, %s6
  %s9 = scalar_select 0, %s8, %s6
  $region1: #{tpu_custom_call.1} parent=0
    #allocation2 [shape = 'u8[16384]{0}', space=vmem, size = 0x4000, scoped, tag = 'input window, operand 0, single buffered']
    #allocation3 [shape = 's32[1]{0}', space=sflag, size = 0x4, scoped, tag = 'scoped memory for tpu_custom_call.1']
    #allocation4 [shape = 's32[1]{0}', space=sflag, size = 0x4, scoped, tag = 'scoped memory for tpu_custom_call.1']
    #allocation5 [shape = 'u8[16384]{0}', space=vmem, size = 0x4000, scoped, tag = 'input window, operand 1, single buffered']
    #allocation6 [shape = 's32[1]{0}', space=sflag, size = 0x4, scoped, tag = 'scoped memory for tpu_custom_call.1']
    #allocation7 [shape = 'u8[16384]{0}', space=vmem, size = 0x4000, scoped, tag = 'input window, operand 2, single buffered']
    #allocation8 [shape = 'u8[12288]{0}', space=vmem, size = 0x3000, scoped, tag = 'input window, operand 3, single buffered']
    #allocation9 [shape = 's32[1]{0}', space=sflag, size = 0x4, scoped, tag = 'scoped memory for tpu_custom_call.1']
    #allocation10 [shape = 'u8[32768]{0}', space=vmem, size = 0x8000, scoped, tag = 'output window, operand 0, single buffered']
    %10 = vsyncpa [#allocation3], 0
    %11 = vsyncpa [#allocation6], 0
    %12 = vsyncpa [#allocation9], 0
    %13 = vsyncpa [#allocation4], 0
    // Predicated region
    $region2: #{tpu_custom_call.1} parent=1 // pred_check
      _
    $region3: #{tpu_custom_call.1} parent=1 // pred_check_branch
      %15 = sbr.rel (0) target = $region5
    $region4: #{tpu_custom_call.1} parent=1 // pred_region
      %17 = vsyncadd [#allocation3], 0
      %s18 = sshll.u32 %s0, 4
      %s19 = int_to_ptr.hbm [resolvable:$true] %s18
      %s20 = sshll.u32 [#allocation2], 4
      %s21 = int_to_ptr.vmem [resolvable:$true] %s20
      %26 = dma.hbm_to_vmem [thread:$0]  %s19, 512, %s21, [#allocation3], 256, 256, 16
    $region5: #{tpu_custom_call.1} parent=1 // pred_fallthru
      _
    // Predicated region
    $region6: #{tpu_custom_call.1} parent=1 // pred_check
      _
    $region7: #{tpu_custom_call.1} parent=1 // pred_check_branch
      %28 = sbr.rel (0) target = $region9
    $region8: #{tpu_custom_call.1} parent=1 // pred_region
      %30 = vsyncadd [#allocation6], 0
      %s31 = sshll.u32 %s1, 4
      %s32 = int_to_ptr.hbm [resolvable:$true] %s31
      %s33 = sshll.u32 [#allocation5], 4
      %s34 = int_to_ptr.vmem [resolvable:$true] %s33
      %39 = dma.hbm_to_vmem [thread:$0]  %s32, 512, %s34, [#allocation6], 256, 256, 16
    $region9: #{tpu_custom_call.1} parent=1 // pred_fallthru
      _
    // Predicated region
    $region10: #{tpu_custom_call.1} parent=1 // pred_check
      _
    $region11: #{tpu_custom_call.1} parent=1 // pred_check_branch
      %41 = sbr.rel (0) target = $region13
    $region12: #{tpu_custom_call.1} parent=1 // pred_region
      %43 = vsyncadd [#allocation6], 0
      %s44 = sshll.u32 %s2, 4
      %s45 = int_to_ptr.hbm [resolvable:$true] %s44
      %s46 = sshll.u32 [#allocation7], 4
      %s47 = int_to_ptr.vmem [resolvable:$true] %s46
      %52 = dma.hbm_to_vmem [thread:$0]  %s45, 512, %s47, [#allocation6], 128, 128, 8
    $region13: #{tpu_custom_call.1} parent=1 // pred_fallthru
      _
    // Predicated region
    $region14: #{tpu_custom_call.1} parent=1 // pred_check
      _
    $region15: #{tpu_custom_call.1} parent=1 // pred_check_branch
      %54 = sbr.rel (0) target = $region17
    $region16: #{tpu_custom_call.1} parent=1 // pred_region
      %56 = vsyncadd [#allocation9], 0
      %s57 = sshll.u32 %s3, 4
      %s58 = int_to_ptr.hbm [resolvable:$true] %s57
      %s59 = sshll.u32 [#allocation8], 4
      %s60 = int_to_ptr.vmem [resolvable:$true] %s59
      %65 = dma.hbm_to_vmem [thread:$0]  %s58, 384, %s60, [#allocation9], 192, 192, 12
    $region17: #{tpu_custom_call.1} parent=1 // pred_fallthru
      _
    // Predicated region
    $region18: #{tpu_custom_call.1} parent=1 // pred_check
      _
    $region19: #{tpu_custom_call.1} parent=1 // pred_check_branch
      %67 = sbr.rel (0) target = $region21
    $region20: #{tpu_custom_call.1} parent=1 // pred_region
      _
    $region21: #{tpu_custom_call.1} parent=1 // pred_fallthru
      _
    // Predicated region
    $region22: #{tpu_custom_call.1} parent=1 // pred_check
      _
    $region23: #{tpu_custom_call.1} parent=1 // pred_check_branch
      %69 = sbr.rel (0) target = $region25
    $region24: #{tpu_custom_call.1} parent=1 // pred_region
      %71 = dma.done [#allocation3], 512
    $region25: #{tpu_custom_call.1} parent=1 // pred_fallthru
      _
    // Predicated region
    $region26: #{tpu_custom_call.1} parent=1 // pred_check
      _
    $region27: #{tpu_custom_call.1} parent=1 // pred_check_branch
      %73 = sbr.rel (0) target = $region29
    $region28: #{tpu_custom_call.1} parent=1 // pred_region
      %75 = dma.done [#allocation6], 512
    $region29: #{tpu_custom_call.1} parent=1 // pred_fallthru
      _
    // Predicated region
    $region30: #{tpu_custom_call.1} parent=1 // pred_check
      _
    $region31: #{tpu_custom_call.1} parent=1 // pred_check_branch
      %77 = sbr.rel (0) target = $region33
    $region32: #{tpu_custom_call.1} parent=1 // pred_region
      %79 = dma.done [#allocation6], 512
    $region33: #{tpu_custom_call.1} parent=1 // pred_fallthru
      _
    // Predicated region
    $region34: #{tpu_custom_call.1} parent=1 // pred_check
      _
    $region35: #{tpu_custom_call.1} parent=1 // pred_check_branch
      %81 = sbr.rel (0) target = $region37
    $region36: #{tpu_custom_call.1} parent=1 // pred_region
      %83 = dma.done [#allocation9], 384
    $region37: #{tpu_custom_call.1} parent=1 // pred_fallthru
      _
    %v85 = vld [vmem:[#allocation5] sm:$0xff]
    %v86 = vld [vmem:[#allocation5 + $0x8] sm:$0xff]
    %v87 = vld [vmem:[#allocation5 + $0x10] sm:$0x11]
    %v88 = vld [vmem:[#allocation5 + $0x18] sm:$0x11]
    %v89 = vld [vmem:[#allocation2] sm:$0xff]
    %v90 = vld [vmem:[#allocation2 + $0x8] sm:$0xff]
    %v91 = vld [vmem:[#allocation2 + $0x10] sm:$0xff]
    %v92 = vld [vmem:[#allocation2 + $0x18] sm:$0xff]
    %v93 = vunpack.c.l.bf16 %v89
    %v94 = vunpack.c.h.bf16 %v89
    %v95 = vunpack.c.l.bf16 %v90
    %v96 = vunpack.c.h.bf16 %v90
    %v97 = vunpack.c.l.bf16 %v91
    %v98 = vunpack.c.h.bf16 %v91
    %v99 = vunpack.c.l.bf16 %v92
    %v100 = vunpack.c.h.bf16 %v92
    %101 = vrot.lane.b32.xlu0 %v93, 17
    %v102 = vpop.permute.xlu0 %101
    %103 = vrot.lane.b32.xlu0 %v97, 17
    %v104 = vpop.permute.xlu0 %103
    %105 = vrot.lane.b32.xlu0 %v94, 17
    %v106 = vpop.permute.xlu0 %105
    %107 = vrot.lane.b32.xlu0 %v98, 17
    %v108 = vpop.permute.xlu0 %107
    %109 = vrot.lane.b32.xlu0 %v95, 17
    %v110 = vpop.permute.xlu0 %109
    %111 = vrot.lane.b32.xlu0 %v99, 17
    %v112 = vpop.permute.xlu0 %111
    %113 = vrot.lane.b32.xlu0 %v96, 17
    %v114 = vpop.permute.xlu0 %113
    %115 = vrot.lane.b32.xlu0 %v100, 17
    %v116 = vpop.permute.xlu0 %115
    %v117 = vlaneseq
    %v118 = vand.u32 %v117, 127
    %vm119 = vcmp.lt.s32.totalorder %v118, 17
    %v120 = vsel %vm119, %v110, %v114
    %v121 = vsel %vm119, %v112, %v116
    %v122 = vsel %vm119, %v106, %v110
    %v123 = vsel %vm119, %v108, %v112
    %v124 = vsel %vm119, %v102, %v106
    %v125 = vsel %vm119, %v104, %v108
    %v126 = vsel %vm119, %v114, %v102
    %v127 = vsel %vm119, %v116, %v104
    %v128 = vpack.c.bf16 %v124, %v126
    %v129 = vpack.c.bf16 %v120, %v122
    %v130 = vpack.c.bf16 %v125, %v127
    %v131 = vpack.c.bf16 %v121, %v123
    %v134 = vunpack.c.l.b16 %v85
    %v135 = vunpack.c.h.b16 %v85
    %v136 = vunpack.c.l.b16 %v86
    %v137 = vunpack.c.h.b16 %v86
    %v138 = vpack.c.b16 %v134, %v134
    %v139 = vpack.c.b16 %v135, %v135
    %v140 = vpack.c.b16 %v136, %v136
    %v141 = vpack.c.b16 %v137, %v137
    %v143 = vpack.i.b16 %v138, %v138
    %v145 = vperm.slane %v143, 0
    %v147 = vpack.i.b16 %v139, %v139
    %v149 = vperm.slane %v147, 0
    %v151 = vpack.i.b16 %v140, %v140
    %v153 = vperm.slane %v151, 0
    %v155 = vpack.i.b16 %v141, %v141
    %v157 = vperm.slane %v155, 0
    %v158 = vunpack.c.l.bf16 %v128
    %v159 = vunpack.c.h.bf16 %v128
    %v160 = vunpack.c.l.bf16 %v129
    %v161 = vunpack.c.h.bf16 %v129
    %v162 = vunpack.c.l.bf16 %v130
    %v163 = vunpack.c.h.bf16 %v130
    %v164 = vunpack.c.l.bf16 %v131
    %v165 = vunpack.c.h.bf16 %v131
    %v166 = vunpack.c.l.bf16 %v145
    %v167 = vunpack.c.l.bf16 %v149
    %v168 = vunpack.c.l.bf16 %v153
    %v169 = vunpack.c.l.bf16 %v157
    %v170 = vmul.f32 %v158, %v166
    %v171 = vmul.f32 %v159, %v167
    %v172 = vmul.f32 %v160, %v168
    %v173 = vmul.f32 %v161, %v169
    %v174 = vmul.f32 %v162, %v166
    %v175 = vmul.f32 %v163, %v167
    %v176 = vmul.f32 %v164, %v168
    %v177 = vmul.f32 %v165, %v169
    %v178 = vpack.c.bf16 %v171, %v170
    %v179 = vpack.c.bf16 %v173, %v172
    %v180 = vpack.c.bf16 %v175, %v174
    %v181 = vpack.c.bf16 %v177, %v176
    %182 = vrot.lane.b32.xlu0 %v93, 16
    %v183 = vpop.permute.xlu0 %182
    %184 = vrot.lane.b32.xlu0 %v97, 16
    %v185 = vpop.permute.xlu0 %184
    %186 = vrot.lane.b32.xlu0 %v94, 16
    %v187 = vpop.permute.xlu0 %186
    %188 = vrot.lane.b32.xlu0 %v98, 16
    %v189 = vpop.permute.xlu0 %188
    %190 = vrot.lane.b32.xlu0 %v95, 16
    %v191 = vpop.permute.xlu0 %190
    %192 = vrot.lane.b32.xlu0 %v99, 16
    %v193 = vpop.permute.xlu0 %192
    %194 = vrot.lane.b32.xlu0 %v96, 16
    %v195 = vpop.permute.xlu0 %194
    %196 = vrot.lane.b32.xlu0 %v100, 16
    %v197 = vpop.permute.xlu0 %196
    %vm198 = vcmp.lt.s32.totalorder %v118, 16
    %v199 = vsel %vm198, %v191, %v195
    %v200 = vsel %vm198, %v193, %v197
    %v201 = vsel %vm198, %v187, %v191
    %v202 = vsel %vm198, %v189, %v193
    %v203 = vsel %vm198, %v183, %v187
    %v204 = vsel %vm198, %v185, %v189
    %v205 = vsel %vm198, %v195, %v183
    %v206 = vsel %vm198, %v197, %v185
    %v207 = vpack.c.bf16 %v203, %v205
    %v208 = vpack.c.bf16 %v199, %v201
    %v209 = vpack.c.bf16 %v204, %v206
    %v210 = vpack.c.bf16 %v200, %v202
    %v211 = vshrl.u32 %v138, 16
    %v212 = vpack.i.b16 %v211, %v211
    %v214 = vperm.slane %v212, 0
    %v215 = vshrl.u32 %v139, 16
    %v216 = vpack.i.b16 %v215, %v215
    %v218 = vperm.slane %v216, 0
    %v219 = vshrl.u32 %v140, 16
    %v220 = vpack.i.b16 %v219, %v219
    %v222 = vperm.slane %v220, 0
    %v223 = vshrl.u32 %v141, 16
    %v224 = vpack.i.b16 %v223, %v223
    %v226 = vperm.slane %v224, 0
    %v227 = vunpack.c.l.bf16 %v207
    %v228 = vunpack.c.h.bf16 %v207
    %v229 = vunpack.c.l.bf16 %v208
    %v230 = vunpack.c.h.bf16 %v208
    %v231 = vunpack.c.l.bf16 %v209
    %v232 = vunpack.c.h.bf16 %v209
    %v233 = vunpack.c.l.bf16 %v210
    %v234 = vunpack.c.h.bf16 %v210
    %v235 = vunpack.c.l.bf16 %v214
    %v236 = vunpack.c.l.bf16 %v218
    %v237 = vunpack.c.l.bf16 %v222
    %v238 = vunpack.c.l.bf16 %v226
    %v239 = vmul.f32 %v227, %v235
    %v240 = vmul.f32 %v228, %v236
    %v241 = vmul.f32 %v229, %v237
    %v242 = vmul.f32 %v230, %v238
    %v243 = vmul.f32 %v231, %v235
    %v244 = vmul.f32 %v232, %v236
    %v245 = vmul.f32 %v233, %v237
    %v246 = vmul.f32 %v234, %v238
    %v247 = vpack.c.bf16 %v240, %v239
    %v248 = vpack.c.bf16 %v242, %v241
    %v249 = vpack.c.bf16 %v244, %v243
    %v250 = vpack.c.bf16 %v246, %v245
    %251 = vrot.lane.b32.xlu0 %v93, 15
    %v252 = vpop.permute.xlu0 %251
    %253 = vrot.lane.b32.xlu0 %v97, 15
    %v254 = vpop.permute.xlu0 %253
    %255 = vrot.lane.b32.xlu0 %v94, 15
    %v256 = vpop.permute.xlu0 %255
    %257 = vrot.lane.b32.xlu0 %v98, 15
    %v258 = vpop.permute.xlu0 %257
    %259 = vrot.lane.b32.xlu0 %v95, 15
    %v260 = vpop.permute.xlu0 %259
    %261 = vrot.lane.b32.xlu0 %v99, 15
    %v262 = vpop.permute.xlu0 %261
    %263 = vrot.lane.b32.xlu0 %v96, 15
    %v264 = vpop.permute.xlu0 %263
    %265 = vrot.lane.b32.xlu0 %v100, 15
    %v266 = vpop.permute.xlu0 %265
    %vm267 = vcmp.lt.s32.totalorder %v118, 15
    %v268 = vsel %vm267, %v260, %v264
    %v269 = vsel %vm267, %v262, %v266
    %v270 = vsel %vm267, %v256, %v260
    %v271 = vsel %vm267, %v258, %v262
    %v272 = vsel %vm267, %v252, %v256
    %v273 = vsel %vm267, %v254, %v258
    %v274 = vsel %vm267, %v264, %v252
    %v275 = vsel %vm267, %v266, %v254
    %v276 = vpack.c.bf16 %v272, %v274
    %v277 = vpack.c.bf16 %v268, %v270
    %v278 = vpack.c.bf16 %v273, %v275
    %v279 = vpack.c.bf16 %v269, %v271
    %v280 = vperm.slane %v143, 1
    %v281 = vperm.slane %v147, 1
    %v282 = vperm.slane %v151, 1
    %v283 = vperm.slane %v155, 1
    %v284 = vunpack.c.l.bf16 %v276
    %v285 = vunpack.c.h.bf16 %v276
    %v286 = vunpack.c.l.bf16 %v277
    %v287 = vunpack.c.h.bf16 %v277
    %v288 = vunpack.c.l.bf16 %v278
    %v289 = vunpack.c.h.bf16 %v278
    %v290 = vunpack.c.l.bf16 %v279
    %v291 = vunpack.c.h.bf16 %v279
    %v292 = vunpack.c.l.bf16 %v280
    %v293 = vunpack.c.l.bf16 %v281
    %v294 = vunpack.c.l.bf16 %v282
    %v295 = vunpack.c.l.bf16 %v283
    %v296 = vmul.f32 %v284, %v292
    %v297 = vmul.f32 %v285, %v293
    %v298 = vmul.f32 %v286, %v294
    %v299 = vmul.f32 %v287, %v295
    %v300 = vmul.f32 %v288, %v292
    %v301 = vmul.f32 %v289, %v293
    %v302 = vmul.f32 %v290, %v294
    %v303 = vmul.f32 %v291, %v295
    %v304 = vpack.c.bf16 %v297, %v296
    %v305 = vpack.c.bf16 %v299, %v298
    %v306 = vpack.c.bf16 %v301, %v300
    %v307 = vpack.c.bf16 %v303, %v302
    %308 = vrot.lane.b32.xlu0 %v93, 1
    %v309 = vpop.permute.xlu0 %308
    %310 = vrot.lane.b32.xlu0 %v97, 1
    %v311 = vpop.permute.xlu0 %310
    %312 = vrot.lane.b32.xlu0 %v94, 1
    %v313 = vpop.permute.xlu0 %312
    %314 = vrot.lane.b32.xlu0 %v98, 1
    %v315 = vpop.permute.xlu0 %314
    %316 = vrot.lane.b32.xlu0 %v95, 1
    %v317 = vpop.permute.xlu0 %316
    %318 = vrot.lane.b32.xlu0 %v99, 1
    %v319 = vpop.permute.xlu0 %318
    %320 = vrot.lane.b32.xlu0 %v96, 1
    %v321 = vpop.permute.xlu0 %320
    %322 = vrot.lane.b32.xlu0 %v100, 1
    %v323 = vpop.permute.xlu0 %322
    %vm324 = vcmp.lt.s32.totalorder %v118, 1
    %v325 = vsel %vm324, %v317, %v321
    %v326 = vsel %vm324, %v319, %v323
    %v327 = vsel %vm324, %v313, %v317
    %v328 = vsel %vm324, %v315, %v319
    %v329 = vsel %vm324, %v309, %v313
    %v330 = vsel %vm324, %v311, %v315
    %v331 = vsel %vm324, %v321, %v309
    %v332 = vsel %vm324, %v323, %v311
    %v333 = vpack.c.bf16 %v329, %v331
    %v334 = vpack.c.bf16 %v325, %v327
    %v335 = vpack.c.bf16 %v330, %v332
    %v336 = vpack.c.bf16 %v326, %v328
    %v337 = vperm.slane %v212, 1
    %v338 = vperm.slane %v216, 1
    %v339 = vperm.slane %v220, 1
    %v340 = vperm.slane %v224, 1
    %v341 = vunpack.c.l.bf16 %v333
    %v342 = vunpack.c.h.bf16 %v333
    %v343 = vunpack.c.l.bf16 %v334
    %v344 = vunpack.c.h.bf16 %v334
    %v345 = vunpack.c.l.bf16 %v335
    %v346 = vunpack.c.h.bf16 %v335
    %v347 = vunpack.c.l.bf16 %v336
    %v348 = vunpack.c.h.bf16 %v336
    %v349 = vunpack.c.l.bf16 %v337
    %v350 = vunpack.c.l.bf16 %v338
    %v351 = vunpack.c.l.bf16 %v339
    %v352 = vunpack.c.l.bf16 %v340
    %v353 = vmul.f32 %v341, %v349
    %v354 = vmul.f32 %v342, %v350
    %v355 = vmul.f32 %v343, %v351
    %v356 = vmul.f32 %v344, %v352
    %v357 = vmul.f32 %v345, %v349
    %v358 = vmul.f32 %v346, %v350
    %v359 = vmul.f32 %v347, %v351
    %v360 = vmul.f32 %v348, %v352
    %v361 = vpack.c.bf16 %v354, %v353
    %v362 = vpack.c.bf16 %v356, %v355
    %v363 = vpack.c.bf16 %v358, %v357
    %v364 = vpack.c.bf16 %v360, %v359
    %365 = vrot.lane.b32.xlu0 %v93, 127
    %v366 = vpop.permute.xlu0 %365
    %367 = vrot.lane.b32.xlu0 %v97, 127
    %v368 = vpop.permute.xlu0 %367
    %369 = vrot.lane.b32.xlu0 %v94, 127
    %v370 = vpop.permute.xlu0 %369
    %371 = vrot.lane.b32.xlu0 %v98, 127
    %v372 = vpop.permute.xlu0 %371
    %373 = vrot.lane.b32.xlu0 %v95, 127
    %v374 = vpop.permute.xlu0 %373
    %375 = vrot.lane.b32.xlu0 %v99, 127
    %v376 = vpop.permute.xlu0 %375
    %377 = vrot.lane.b32.xlu0 %v96, 127
    %v378 = vpop.permute.xlu0 %377
    %379 = vrot.lane.b32.xlu0 %v100, 127
    %v380 = vpop.permute.xlu0 %379
    %vm381 = vcmp.lt.s32.totalorder %v118, 127
    %v382 = vsel %vm381, %v374, %v378
    %v383 = vsel %vm381, %v376, %v380
    %v384 = vsel %vm381, %v370, %v374
    %v385 = vsel %vm381, %v372, %v376
    %v386 = vsel %vm381, %v366, %v370
    %v387 = vsel %vm381, %v368, %v372
    %v388 = vsel %vm381, %v378, %v366
    %v389 = vsel %vm381, %v380, %v368
    %v390 = vpack.c.bf16 %v384, %v386
    %v391 = vpack.c.bf16 %v388, %v382
    %v392 = vpack.c.bf16 %v385, %v387
    %v393 = vpack.c.bf16 %v389, %v383
    %v394 = vperm.slane %v212, 2
    %v395 = vperm.slane %v216, 2
    %v396 = vperm.slane %v220, 2
    %v397 = vperm.slane %v224, 2
    %v398 = vunpack.c.l.bf16 %v390
    %v399 = vunpack.c.h.bf16 %v390
    %v400 = vunpack.c.l.bf16 %v391
    %v401 = vunpack.c.h.bf16 %v391
    %v402 = vunpack.c.l.bf16 %v392
    %v403 = vunpack.c.h.bf16 %v392
    %v404 = vunpack.c.l.bf16 %v393
    %v405 = vunpack.c.h.bf16 %v393
    %v406 = vunpack.c.l.bf16 %v394
    %v407 = vunpack.c.l.bf16 %v395
    %v408 = vunpack.c.l.bf16 %v396
    %v409 = vunpack.c.l.bf16 %v397
    %v410 = vmul.f32 %v398, %v406
    %v411 = vmul.f32 %v399, %v407
    %v412 = vmul.f32 %v400, %v408
    %v413 = vmul.f32 %v401, %v409
    %v414 = vmul.f32 %v402, %v406
    %v415 = vmul.f32 %v403, %v407
    %v416 = vmul.f32 %v404, %v408
    %v417 = vmul.f32 %v405, %v409
    %v418 = vpack.c.bf16 %v411, %v410
    %v419 = vpack.c.bf16 %v413, %v412
    %v420 = vpack.c.bf16 %v415, %v414
    %v421 = vpack.c.bf16 %v417, %v416
    %422 = vrot.lane.b32.xlu0 %v93, 113
    %v423 = vpop.permute.xlu0 %422
    %424 = vrot.lane.b32.xlu0 %v97, 113
    %v425 = vpop.permute.xlu0 %424
    %426 = vrot.lane.b32.xlu0 %v94, 113
    %v427 = vpop.permute.xlu0 %426
    %428 = vrot.lane.b32.xlu0 %v98, 113
    %v429 = vpop.permute.xlu0 %428
    %430 = vrot.lane.b32.xlu0 %v95, 113
    %v431 = vpop.permute.xlu0 %430
    %432 = vrot.lane.b32.xlu0 %v99, 113
    %v433 = vpop.permute.xlu0 %432
    %434 = vrot.lane.b32.xlu0 %v96, 113
    %v435 = vpop.permute.xlu0 %434
    %436 = vrot.lane.b32.xlu0 %v100, 113
    %v437 = vpop.permute.xlu0 %436
    %vm438 = vcmp.lt.s32.totalorder %v118, 113
    %v439 = vsel %vm438, %v431, %v435
    %v440 = vsel %vm438, %v433, %v437
    %v441 = vsel %vm438, %v427, %v431
    %v442 = vsel %vm438, %v429, %v433
    %v443 = vsel %vm438, %v423, %v427
    %v444 = vsel %vm438, %v425, %v429
    %v445 = vsel %vm438, %v435, %v423
    %v446 = vsel %vm438, %v437, %v425
    %v447 = vpack.c.bf16 %v441, %v443
    %v448 = vpack.c.bf16 %v445, %v439
    %v449 = vpack.c.bf16 %v442, %v444
    %v450 = vpack.c.bf16 %v446, %v440
    %v451 = vperm.slane %v143, 3
    %v452 = vperm.slane %v147, 3
    %v453 = vperm.slane %v151, 3
    %v454 = vperm.slane %v155, 3
    %v455 = vunpack.c.l.bf16 %v447
    %v456 = vunpack.c.h.bf16 %v447
    %v457 = vunpack.c.l.bf16 %v448
    %v458 = vunpack.c.h.bf16 %v448
    %v459 = vunpack.c.l.bf16 %v449
    %v460 = vunpack.c.h.bf16 %v449
    %v461 = vunpack.c.l.bf16 %v450
    %v462 = vunpack.c.h.bf16 %v450
    %v463 = vunpack.c.l.bf16 %v451
    %v464 = vunpack.c.l.bf16 %v452
    %v465 = vunpack.c.l.bf16 %v453
    %v466 = vunpack.c.l.bf16 %v454
    %v467 = vmul.f32 %v455, %v463
    %v468 = vmul.f32 %v456, %v464
    %v469 = vmul.f32 %v457, %v465
    %v470 = vmul.f32 %v458, %v466
    %v471 = vmul.f32 %v459, %v463
    %v472 = vmul.f32 %v460, %v464
    %v473 = vmul.f32 %v461, %v465
    %v474 = vmul.f32 %v462, %v466
    %v475 = vpack.c.bf16 %v468, %v467
    %v476 = vpack.c.bf16 %v470, %v469
    %v477 = vpack.c.bf16 %v472, %v471
    %v478 = vpack.c.bf16 %v474, %v473
    %479 = vrot.lane.b32.xlu0 %v93, 112
    %v480 = vpop.permute.xlu0 %479
    %481 = vrot.lane.b32.xlu0 %v97, 112
    %v482 = vpop.permute.xlu0 %481
    %483 = vrot.lane.b32.xlu0 %v94, 112
    %v484 = vpop.permute.xlu0 %483
    %485 = vrot.lane.b32.xlu0 %v98, 112
    %v486 = vpop.permute.xlu0 %485
    %487 = vrot.lane.b32.xlu0 %v95, 112
    %v488 = vpop.permute.xlu0 %487
    %489 = vrot.lane.b32.xlu0 %v99, 112
    %v490 = vpop.permute.xlu0 %489
    %491 = vrot.lane.b32.xlu0 %v96, 112
    %v492 = vpop.permute.xlu0 %491
    %493 = vrot.lane.b32.xlu0 %v100, 112
    %v494 = vpop.permute.xlu0 %493
    %vm495 = vcmp.lt.s32.totalorder %v118, 112
    %v496 = vsel %vm495, %v488, %v492
    %v497 = vsel %vm495, %v490, %v494
    %v498 = vsel %vm495, %v484, %v488
    %v499 = vsel %vm495, %v486, %v490
    %v500 = vsel %vm495, %v480, %v484
    %v501 = vsel %vm495, %v482, %v486
    %v502 = vsel %vm495, %v492, %v480
    %v503 = vsel %vm495, %v494, %v482
    %v504 = vpack.c.bf16 %v498, %v500
    %v505 = vpack.c.bf16 %v502, %v496
    %v506 = vpack.c.bf16 %v499, %v501
    %v507 = vpack.c.bf16 %v503, %v497
    %v508 = vperm.slane %v212, 3
    %v509 = vperm.slane %v216, 3
    %v510 = vperm.slane %v220, 3
    %v511 = vperm.slane %v224, 3
    %v512 = vunpack.c.l.bf16 %v504
    %v513 = vunpack.c.h.bf16 %v504
    %v514 = vunpack.c.l.bf16 %v505
    %v515 = vunpack.c.h.bf16 %v505
    %v516 = vunpack.c.l.bf16 %v506
    %v517 = vunpack.c.h.bf16 %v506
    %v518 = vunpack.c.l.bf16 %v507
    %v519 = vunpack.c.h.bf16 %v507
    %v520 = vunpack.c.l.bf16 %v508
    %v521 = vunpack.c.l.bf16 %v509
    %v522 = vunpack.c.l.bf16 %v510
    %v523 = vunpack.c.l.bf16 %v511
    %v524 = vmul.f32 %v512, %v520
    %v525 = vmul.f32 %v513, %v521
    %v526 = vmul.f32 %v514, %v522
    %v527 = vmul.f32 %v515, %v523
    %v528 = vmul.f32 %v516, %v520
    %v529 = vmul.f32 %v517, %v521
    %v530 = vmul.f32 %v518, %v522
    %v531 = vmul.f32 %v519, %v523
    %v532 = vpack.c.bf16 %v525, %v524
    %v533 = vpack.c.bf16 %v527, %v526
    %v534 = vpack.c.bf16 %v529, %v528
    %v535 = vpack.c.bf16 %v531, %v530
    %536 = vrot.lane.b32.xlu0 %v93, 111
    %v537 = vpop.permute.xlu0 %536
    %538 = vrot.lane.b32.xlu0 %v97, 111
    %v539 = vpop.permute.xlu0 %538
    %540 = vrot.lane.b32.xlu0 %v94, 111
    %v541 = vpop.permute.xlu0 %540
    %542 = vrot.lane.b32.xlu0 %v98, 111
    %v543 = vpop.permute.xlu0 %542
    %544 = vrot.lane.b32.xlu0 %v95, 111
    %v545 = vpop.permute.xlu0 %544
    %546 = vrot.lane.b32.xlu0 %v99, 111
    %v547 = vpop.permute.xlu0 %546
    %548 = vrot.lane.b32.xlu0 %v96, 111
    %v549 = vpop.permute.xlu0 %548
    %550 = vrot.lane.b32.xlu0 %v100, 111
    %v551 = vpop.permute.xlu0 %550
    %vm552 = vcmp.lt.s32.totalorder %v118, 111
    %v553 = vsel %vm552, %v545, %v549
    %v554 = vsel %vm552, %v547, %v551
    %v555 = vsel %vm552, %v541, %v545
    %v556 = vsel %vm552, %v543, %v547
    %v557 = vsel %vm552, %v537, %v541
    %v558 = vsel %vm552, %v539, %v543
    %v559 = vsel %vm552, %v549, %v537
    %v560 = vsel %vm552, %v551, %v539
    %v561 = vpack.c.bf16 %v555, %v557
    %v562 = vpack.c.bf16 %v559, %v553
    %v563 = vpack.c.bf16 %v556, %v558
    %v564 = vpack.c.bf16 %v560, %v554
    %v567 = vunpack.c.l.b16 %v87
    %v568 = vunpack.c.h.b16 %v87
    %v569 = vunpack.c.l.b16 %v88
    %v570 = vunpack.c.h.b16 %v88
    %v571 = vpack.c.b16 %v567, %v567
    %v572 = vpack.c.b16 %v568, %v568
    %v573 = vpack.c.b16 %v569, %v569
    %v574 = vpack.c.b16 %v570, %v570
    %v576 = vpack.i.b16 %v571, %v571
    %v578 = vperm.slane %v576, 0
    %v580 = vpack.i.b16 %v572, %v572
    %v582 = vperm.slane %v580, 0
    %v584 = vpack.i.b16 %v573, %v573
    %v586 = vperm.slane %v584, 0
    %v588 = vpack.i.b16 %v574, %v574
    %v590 = vperm.slane %v588, 0
    %v591 = vunpack.c.l.bf16 %v561
    %v592 = vunpack.c.h.bf16 %v561
    %v593 = vunpack.c.l.bf16 %v562
    %v594 = vunpack.c.h.bf16 %v562
    %v595 = vunpack.c.l.bf16 %v563
    %v596 = vunpack.c.h.bf16 %v563
    %v597 = vunpack.c.l.bf16 %v564
    %v598 = vunpack.c.h.bf16 %v564
    %v599 = vunpack.c.l.bf16 %v578
    %v600 = vunpack.c.l.bf16 %v582
    %v601 = vunpack.c.l.bf16 %v586
    %v602 = vunpack.c.l.bf16 %v590
    %v603 = vmul.f32 %v591, %v599
    %v604 = vmul.f32 %v592, %v600
    %v605 = vmul.f32 %v593, %v601
    %v606 = vmul.f32 %v594, %v602
    %v607 = vmul.f32 %v595, %v599
    %v608 = vmul.f32 %v596, %v600
    %v609 = vmul.f32 %v597, %v601
    %v610 = vmul.f32 %v598, %v602
    %v611 = vpack.c.bf16 %v604, %v603
    %v612 = vpack.c.bf16 %v606, %v605
    %v613 = vpack.c.bf16 %v608, %v607
    %v614 = vpack.c.bf16 %v610, %v609
    %v619 = vunpack.c.l.b16 %v178
    %v620 = vunpack.c.h.b16 %v178
    %v621 = vunpack.c.l.b16 %v179
    %v622 = vunpack.c.h.b16 %v179
    %v623 = vunpack.c.l.b16 %v180
    %v624 = vunpack.c.h.b16 %v180
    %v625 = vunpack.c.l.b16 %v181
    %v626 = vunpack.c.h.b16 %v181
    %v627 = vpack.c.b16 %v623, %v619
    %v628 = vpack.c.b16 %v624, %v620
    %v629 = vpack.c.b16 %v625, %v621
    %v630 = vpack.c.b16 %v626, %v622
    %v639 = vunpack.c.l.b16 %v247
    %v640 = vunpack.c.h.b16 %v247
    %v641 = vunpack.c.l.b16 %v248
    %v642 = vunpack.c.h.b16 %v248
    %v643 = vunpack.c.l.b16 %v249
    %v644 = vunpack.c.h.b16 %v249
    %v645 = vunpack.c.l.b16 %v250
    %v646 = vunpack.c.h.b16 %v250
    %v647 = vpack.c.b16 %v643, %v639
    %v648 = vpack.c.b16 %v644, %v640
    %v649 = vpack.c.b16 %v645, %v641
    %v650 = vpack.c.b16 %v646, %v642
    %v659 = vunpack.c.l.b16 %v304
    %v660 = vunpack.c.h.b16 %v304
    %v661 = vunpack.c.l.b16 %v305
    %v662 = vunpack.c.h.b16 %v305
    %v663 = vunpack.c.l.b16 %v306
    %v664 = vunpack.c.h.b16 %v306
    %v665 = vunpack.c.l.b16 %v307
    %v666 = vunpack.c.h.b16 %v307
    %v667 = vpack.c.b16 %v663, %v659
    %v668 = vpack.c.b16 %v664, %v660
    %v669 = vpack.c.b16 %v665, %v661
    %v670 = vpack.c.b16 %v666, %v662
    %v679 = vunpack.c.l.b16 %v361
    %v680 = vunpack.c.h.b16 %v361
    %v681 = vunpack.c.l.b16 %v362
    %v682 = vunpack.c.h.b16 %v362
    %v683 = vunpack.c.l.b16 %v363
    %v684 = vunpack.c.h.b16 %v363
    %v685 = vunpack.c.l.b16 %v364
    %v686 = vunpack.c.h.b16 %v364
    %v687 = vpack.c.b16 %v683, %v679
    %v688 = vpack.c.b16 %v684, %v680
    %v689 = vpack.c.b16 %v685, %v681
    %v690 = vpack.c.b16 %v686, %v682
    %v699 = vunpack.c.l.b16 %v89
    %v700 = vunpack.c.h.b16 %v89
    %v701 = vunpack.c.l.b16 %v90
    %v702 = vunpack.c.h.b16 %v90
    %v703 = vunpack.c.l.b16 %v91
    %v704 = vunpack.c.h.b16 %v91
    %v705 = vunpack.c.l.b16 %v92
    %v706 = vunpack.c.h.b16 %v92
    %v707 = vpack.c.b16 %v703, %v699
    %v708 = vpack.c.b16 %v704, %v700
    %v709 = vpack.c.b16 %v705, %v701
    %v710 = vpack.c.b16 %v706, %v702
    %v719 = vunpack.c.l.b16 %v418
    %v720 = vunpack.c.h.b16 %v418
    %v721 = vunpack.c.l.b16 %v419
    %v722 = vunpack.c.h.b16 %v419
    %v723 = vunpack.c.l.b16 %v420
    %v724 = vunpack.c.h.b16 %v420
    %v725 = vunpack.c.l.b16 %v421
    %v726 = vunpack.c.h.b16 %v421
    %v727 = vpack.c.b16 %v723, %v719
    %v728 = vpack.c.b16 %v724, %v720
    %v729 = vpack.c.b16 %v725, %v721
    %v730 = vpack.c.b16 %v726, %v722
    %v739 = vunpack.c.l.b16 %v475
    %v740 = vunpack.c.h.b16 %v475
    %v741 = vunpack.c.l.b16 %v476
    %v742 = vunpack.c.h.b16 %v476
    %v743 = vunpack.c.l.b16 %v477
    %v744 = vunpack.c.h.b16 %v477
    %v745 = vunpack.c.l.b16 %v478
    %v746 = vunpack.c.h.b16 %v478
    %v747 = vpack.c.b16 %v743, %v739
    %v748 = vpack.c.b16 %v744, %v740
    %v749 = vpack.c.b16 %v745, %v741
    %v750 = vpack.c.b16 %v746, %v742
    %v759 = vunpack.c.l.b16 %v532
    %v760 = vunpack.c.h.b16 %v532
    %v761 = vunpack.c.l.b16 %v533
    %v762 = vunpack.c.h.b16 %v533
    %v763 = vunpack.c.l.b16 %v534
    %v764 = vunpack.c.h.b16 %v534
    %v765 = vunpack.c.l.b16 %v535
    %v766 = vunpack.c.h.b16 %v535
    %v767 = vpack.c.b16 %v763, %v759
    %v768 = vpack.c.b16 %v764, %v760
    %v769 = vpack.c.b16 %v765, %v761
    %v770 = vpack.c.b16 %v766, %v762
    %v779 = vunpack.c.l.b16 %v611
    %v780 = vunpack.c.h.b16 %v611
    %v781 = vunpack.c.l.b16 %v612
    %v782 = vunpack.c.h.b16 %v612
    %v783 = vunpack.c.l.b16 %v613
    %v784 = vunpack.c.h.b16 %v613
    %v785 = vunpack.c.l.b16 %v614
    %v786 = vunpack.c.h.b16 %v614
    %v787 = vpack.c.b16 %v783, %v779
    %v788 = vpack.c.b16 %v784, %v780
    %v789 = vpack.c.b16 %v785, %v781
    %v790 = vpack.c.b16 %v786, %v782
    %v795 = vld [vmem:[#allocation7] sm:$0xff]
    %v796 = vld [vmem:[#allocation7 + $0x8] sm:$0xff]
    %v797 = vld [vmem:[#allocation7 + $0x10] sm:$0xff]
    %v798 = vld [vmem:[#allocation7 + $0x18] sm:$0xff]
    %v803 = vunpack.c.l.b16 %v795
    %v804 = vunpack.c.h.b16 %v795
    %v805 = vunpack.c.l.b16 %v796
    %v806 = vunpack.c.h.b16 %v796
    %v807 = vunpack.c.l.b16 %v797
    %v808 = vunpack.c.h.b16 %v797
    %v809 = vunpack.c.l.b16 %v798
    %v810 = vunpack.c.h.b16 %v798
    %v811 = vpack.c.b16 %v805, %v803
    %v812 = vpack.c.b16 %v806, %v804
    %v813 = vpack.c.b16 %v809, %v807
    %v814 = vpack.c.b16 %v810, %v808
    %vm817 = vcmask 130048
    %v819 = vsel %vm817, %v812, 0
    %v822 = vsel %vm817, %v814, 0
    %824 = vmatpush.bf16.msra.mxu0 %v767
    %825 = vmatpush.bf16.msra.mxu0 %v747
    %826 = vmatpush.bf16.msra.mxu0 %v727
    %827 = vmatpush.bf16.msra.mxu0 %v707
    %828 = vmatpush.bf16.msra.mxu0 %v687
    %829 = vmatpush.bf16.msra.mxu0 %v667
    %830 = vmatpush.bf16.msra.mxu0 %v647
    %831 = vmatpush.bf16.msra.mxu0 %v627
    %832 = vmatmul.bf16.gmra.mxu0 %v811
    %v833 = vpop.f32.mrf.mxu0
    %v834 = vadd.f32 0.0, %v833
    %v835 = vpop.f32.mrf.mxu0
    %v836 = vadd.f32 0.0, %v835
    %837 = vmatmul.bf16.gmra.mxu0 %v813
    %v838 = vpop.f32.mrf.mxu0
    %v839 = vadd.f32 0.0, %v838
    %v840 = vpop.f32.mrf.mxu0
    %v841 = vadd.f32 0.0, %v840
    %842 = vdwg.mxu0
    %843 = vmatpush.bf16.msra.mxu0 0
    %844 = vmatpush.bf16.msra.mxu0 0
    %845 = vmatpush.bf16.msra.mxu0 0
    %846 = vmatpush.bf16.msra.mxu0 0
    %847 = vmatpush.bf16.msra.mxu0 0
    %848 = vmatpush.bf16.msra.mxu0 0
    %849 = vmatpush.bf16.msra.mxu0 0
    %850 = vmatpush.bf16.msra.mxu0 %v787
    %851 = vmatmul.bf16.gmra.mxu0 %v819
    %v852 = vpop.f32.mrf.mxu0
    %v853 = vadd.f32 %v834, %v852
    %v854 = vpop.f32.mrf.mxu0
    %v855 = vadd.f32 %v836, %v854
    %856 = vmatmul.bf16.gmra.mxu0 %v822
    %v857 = vpop.f32.mrf.mxu0
    %v858 = vadd.f32 %v839, %v857
    %v859 = vpop.f32.mrf.mxu0
    %v860 = vadd.f32 %v841, %v859
    %861 = vdwg.mxu0
    %862 = vmatpush.bf16.msra.mxu0 %v768
    %863 = vmatpush.bf16.msra.mxu0 %v748
    %864 = vmatpush.bf16.msra.mxu0 %v728
    %865 = vmatpush.bf16.msra.mxu0 %v708
    %866 = vmatpush.bf16.msra.mxu0 %v688
    %867 = vmatpush.bf16.msra.mxu0 %v668
    %868 = vmatpush.bf16.msra.mxu0 %v648
    %869 = vmatpush.bf16.msra.mxu0 %v628
    %870 = vmatmul.bf16.gmra.mxu0 %v811
    %v871 = vpop.f32.mrf.mxu0
    %v872 = vadd.f32 0.0, %v871
    %v873 = vpop.f32.mrf.mxu0
    %v874 = vadd.f32 0.0, %v873
    %875 = vmatmul.bf16.gmra.mxu0 %v813
    %v876 = vpop.f32.mrf.mxu0
    %v877 = vadd.f32 0.0, %v876
    %v878 = vpop.f32.mrf.mxu0
    %v879 = vadd.f32 0.0, %v878
    %880 = vdwg.mxu0
    %881 = vmatpush.bf16.msra.mxu0 0
    %882 = vmatpush.bf16.msra.mxu0 0
    %883 = vmatpush.bf16.msra.mxu0 0
    %884 = vmatpush.bf16.msra.mxu0 0
    %885 = vmatpush.bf16.msra.mxu0 0
    %886 = vmatpush.bf16.msra.mxu0 0
    %887 = vmatpush.bf16.msra.mxu0 0
    %888 = vmatpush.bf16.msra.mxu0 %v788
    %889 = vmatmul.bf16.gmra.mxu0 %v819
    %v890 = vpop.f32.mrf.mxu0
    %v891 = vadd.f32 %v872, %v890
    %v892 = vpop.f32.mrf.mxu0
    %v893 = vadd.f32 %v874, %v892
    %894 = vmatmul.bf16.gmra.mxu0 %v822
    %v895 = vpop.f32.mrf.mxu0
    %v896 = vadd.f32 %v877, %v895
    %v897 = vpop.f32.mrf.mxu0
    %v898 = vadd.f32 %v879, %v897
    %899 = vdwg.mxu0
    %900 = vmatpush.bf16.msra.mxu0 %v769
    %901 = vmatpush.bf16.msra.mxu0 %v749
    %902 = vmatpush.bf16.msra.mxu0 %v729
    %903 = vmatpush.bf16.msra.mxu0 %v709
    %904 = vmatpush.bf16.msra.mxu0 %v689
    %905 = vmatpush.bf16.msra.mxu0 %v669
    %906 = vmatpush.bf16.msra.mxu0 %v649
    %907 = vmatpush.bf16.msra.mxu0 %v629
    %908 = vmatmul.bf16.gmra.mxu0 %v811
    %v909 = vpop.f32.mrf.mxu0
    %v910 = vadd.f32 0.0, %v909
    %v911 = vpop.f32.mrf.mxu0
    %v912 = vadd.f32 0.0, %v911
    %913 = vmatmul.bf16.gmra.mxu0 %v813
    %v914 = vpop.f32.mrf.mxu0
    %v915 = vadd.f32 0.0, %v914
    %v916 = vpop.f32.mrf.mxu0
    %v917 = vadd.f32 0.0, %v916
    %918 = vdwg.mxu0
    %919 = vmatpush.bf16.msra.mxu0 0
    %920 = vmatpush.bf16.msra.mxu0 0
    %921 = vmatpush.bf16.msra.mxu0 0
    %922 = vmatpush.bf16.msra.mxu0 0
    %923 = vmatpush.bf16.msra.mxu0 0
    %924 = vmatpush.bf16.msra.mxu0 0
    %925 = vmatpush.bf16.msra.mxu0 0
    %926 = vmatpush.bf16.msra.mxu0 %v789
    %927 = vmatmul.bf16.gmra.mxu0 %v819
    %v928 = vpop.f32.mrf.mxu0
    %v929 = vadd.f32 %v910, %v928
    %v930 = vpop.f32.mrf.mxu0
    %v931 = vadd.f32 %v912, %v930
    %932 = vmatmul.bf16.gmra.mxu0 %v822
    %v933 = vpop.f32.mrf.mxu0
    %v934 = vadd.f32 %v915, %v933
    %v935 = vpop.f32.mrf.mxu0
    %v936 = vadd.f32 %v917, %v935
    %937 = vdwg.mxu0
    %938 = vmatpush.bf16.msra.mxu0 %v770
    %939 = vmatpush.bf16.msra.mxu0 %v750
    %940 = vmatpush.bf16.msra.mxu0 %v730
    %941 = vmatpush.bf16.msra.mxu0 %v710
    %942 = vmatpush.bf16.msra.mxu0 %v690
    %943 = vmatpush.bf16.msra.mxu0 %v670
    %944 = vmatpush.bf16.msra.mxu0 %v650
    %945 = vmatpush.bf16.msra.mxu0 %v630
    %946 = vmatmul.bf16.gmra.mxu0 %v811
    %v947 = vpop.f32.mrf.mxu0
    %v948 = vadd.f32 0.0, %v947
    %v949 = vpop.f32.mrf.mxu0
    %v950 = vadd.f32 0.0, %v949
    %951 = vmatmul.bf16.gmra.mxu0 %v813
    %v952 = vpop.f32.mrf.mxu0
    %v953 = vadd.f32 0.0, %v952
    %v954 = vpop.f32.mrf.mxu0
    %v955 = vadd.f32 0.0, %v954
    %956 = vdwg.mxu0
    %957 = vmatpush.bf16.msra.mxu0 0
    %958 = vmatpush.bf16.msra.mxu0 0
    %959 = vmatpush.bf16.msra.mxu0 0
    %960 = vmatpush.bf16.msra.mxu0 0
    %961 = vmatpush.bf16.msra.mxu0 0
    %962 = vmatpush.bf16.msra.mxu0 0
    %963 = vmatpush.bf16.msra.mxu0 0
    %964 = vmatpush.bf16.msra.mxu0 %v790
    %965 = vmatmul.bf16.gmra.mxu0 %v819
    %v966 = vpop.f32.mrf.mxu0
    %v967 = vadd.f32 %v948, %v966
    %v968 = vpop.f32.mrf.mxu0
    %v969 = vadd.f32 %v950, %v968
    %970 = vmatmul.bf16.gmra.mxu0 %v822
    %v971 = vpop.f32.mrf.mxu0
    %v972 = vadd.f32 %v953, %v971
    %v973 = vpop.f32.mrf.mxu0
    %v974 = vadd.f32 %v955, %v973
    %975 = vdwg.mxu0
    %v976 = vmax.f32 %v853, 0.0
    %v977 = vmax.f32 %v891, 0.0
    %v978 = vmax.f32 %v929, 0.0
    %v979 = vmax.f32 %v967, 0.0
    %v980 = vmax.f32 %v855, 0.0
    %v981 = vmax.f32 %v893, 0.0
    %v982 = vmax.f32 %v931, 0.0
    %v983 = vmax.f32 %v969, 0.0
    %v984 = vmax.f32 %v858, 0.0
    %v985 = vmax.f32 %v896, 0.0
    %v986 = vmax.f32 %v934, 0.0
    %v987 = vmax.f32 %v972, 0.0
    %v988 = vmax.f32 %v860, 0.0
    %v989 = vmax.f32 %v898, 0.0
    %v990 = vmax.f32 %v936, 0.0
    %v991 = vmax.f32 %v974, 0.0
    %992 = vrot.lane.b32.xlu0 %v976, 17
    %v993 = vpop.permute.xlu0 %992
    %994 = vrot.lane.b32.xlu0 %v980, 17
    %v995 = vpop.permute.xlu0 %994
    %996 = vrot.lane.b32.xlu0 %v984, 17
    %v997 = vpop.permute.xlu0 %996
    %998 = vrot.lane.b32.xlu0 %v988, 17
    %v999 = vpop.permute.xlu0 %998
    %1000 = vrot.lane.b32.xlu0 %v977, 17
    %v1001 = vpop.permute.xlu0 %1000
    %1002 = vrot.lane.b32.xlu0 %v981, 17
    %v1003 = vpop.permute.xlu0 %1002
    %1004 = vrot.lane.b32.xlu0 %v985, 17
    %v1005 = vpop.permute.xlu0 %1004
    %1006 = vrot.lane.b32.xlu0 %v989, 17
    %v1007 = vpop.permute.xlu0 %1006
    %1008 = vrot.lane.b32.xlu0 %v978, 17
    %v1009 = vpop.permute.xlu0 %1008
    %1010 = vrot.lane.b32.xlu0 %v982, 17
    %v1011 = vpop.permute.xlu0 %1010
    %1012 = vrot.lane.b32.xlu0 %v986, 17
    %v1013 = vpop.permute.xlu0 %1012
    %1014 = vrot.lane.b32.xlu0 %v990, 17
    %v1015 = vpop.permute.xlu0 %1014
    %1016 = vrot.lane.b32.xlu0 %v979, 17
    %v1017 = vpop.permute.xlu0 %1016
    %1018 = vrot.lane.b32.xlu0 %v983, 17
    %v1019 = vpop.permute.xlu0 %1018
    %1020 = vrot.lane.b32.xlu0 %v987, 17
    %v1021 = vpop.permute.xlu0 %1020
    %1022 = vrot.lane.b32.xlu0 %v991, 17
    %v1023 = vpop.permute.xlu0 %1022
    %v1024 = vsel %vm119, %v1009, %v1017
    %v1025 = vsel %vm119, %v1011, %v1019
    %v1026 = vsel %vm119, %v1013, %v1021
    %v1027 = vsel %vm119, %v1015, %v1023
    %v1028 = vsel %vm119, %v1001, %v1009
    %v1029 = vsel %vm119, %v1003, %v1011
    %v1030 = vsel %vm119, %v1005, %v1013
    %v1031 = vsel %vm119, %v1007, %v1015
    %v1032 = vsel %vm119, %v993, %v1001
    %v1033 = vsel %vm119, %v995, %v1003
    %v1034 = vsel %vm119, %v997, %v1005
    %v1035 = vsel %vm119, %v999, %v1007
    %v1036 = vsel %vm119, %v1017, %v993
    %v1037 = vsel %vm119, %v1019, %v995
    %v1038 = vsel %vm119, %v1021, %v997
    %v1039 = vsel %vm119, %v1023, %v999
    %v1040 = vpack.c.bf16 %v1032, %v1036
    %v1041 = vpack.c.bf16 %v1024, %v1028
    %v1042 = vpack.c.bf16 %v1033, %v1037
    %v1043 = vpack.c.bf16 %v1025, %v1029
    %v1044 = vpack.c.bf16 %v1034, %v1038
    %v1045 = vpack.c.bf16 %v1026, %v1030
    %v1046 = vpack.c.bf16 %v1035, %v1039
    %v1047 = vpack.c.bf16 %v1027, %v1031
    %v1048 = vunpack.c.l.bf16 %v1040
    %v1049 = vunpack.c.h.bf16 %v1040
    %v1050 = vunpack.c.l.bf16 %v1041
    %v1051 = vunpack.c.h.bf16 %v1041
    %v1052 = vunpack.c.l.bf16 %v1042
    %v1053 = vunpack.c.h.bf16 %v1042
    %v1054 = vunpack.c.l.bf16 %v1043
    %v1055 = vunpack.c.h.bf16 %v1043
    %v1056 = vunpack.c.l.bf16 %v1044
    %v1057 = vunpack.c.h.bf16 %v1044
    %v1058 = vunpack.c.l.bf16 %v1045
    %v1059 = vunpack.c.h.bf16 %v1045
    %v1060 = vunpack.c.l.bf16 %v1046
    %v1061 = vunpack.c.h.bf16 %v1046
    %v1062 = vunpack.c.l.bf16 %v1047
    %v1063 = vunpack.c.h.bf16 %v1047
    %v1064 = vmul.f32 %v1048, %v166
    %v1065 = vmul.f32 %v1049, %v167
    %v1066 = vmul.f32 %v1050, %v168
    %v1067 = vmul.f32 %v1051, %v169
    %v1068 = vmul.f32 %v1052, %v166
    %v1069 = vmul.f32 %v1053, %v167
    %v1070 = vmul.f32 %v1054, %v168
    %v1071 = vmul.f32 %v1055, %v169
    %v1072 = vmul.f32 %v1056, %v166
    %v1073 = vmul.f32 %v1057, %v167
    %v1074 = vmul.f32 %v1058, %v168
    %v1075 = vmul.f32 %v1059, %v169
    %v1076 = vmul.f32 %v1060, %v166
    %v1077 = vmul.f32 %v1061, %v167
    %v1078 = vmul.f32 %v1062, %v168
    %v1079 = vmul.f32 %v1063, %v169
    %v1080 = vpack.c.bf16 %v1065, %v1064
    %v1081 = vpack.c.bf16 %v1067, %v1066
    %v1082 = vpack.c.bf16 %v1069, %v1068
    %v1083 = vpack.c.bf16 %v1071, %v1070
    %v1084 = vpack.c.bf16 %v1073, %v1072
    %v1085 = vpack.c.bf16 %v1075, %v1074
    %v1086 = vpack.c.bf16 %v1077, %v1076
    %v1087 = vpack.c.bf16 %v1079, %v1078
    %1088 = vrot.lane.b32.xlu0 %v976, 16
    %v1089 = vpop.permute.xlu0 %1088
    %1090 = vrot.lane.b32.xlu0 %v980, 16
    %v1091 = vpop.permute.xlu0 %1090
    %1092 = vrot.lane.b32.xlu0 %v984, 16
    %v1093 = vpop.permute.xlu0 %1092
    %1094 = vrot.lane.b32.xlu0 %v988, 16
    %v1095 = vpop.permute.xlu0 %1094
    %1096 = vrot.lane.b32.xlu0 %v977, 16
    %v1097 = vpop.permute.xlu0 %1096
    %1098 = vrot.lane.b32.xlu0 %v981, 16
    %v1099 = vpop.permute.xlu0 %1098
    %1100 = vrot.lane.b32.xlu0 %v985, 16
    %v1101 = vpop.permute.xlu0 %1100
    %1102 = vrot.lane.b32.xlu0 %v989, 16
    %v1103 = vpop.permute.xlu0 %1102
    %1104 = vrot.lane.b32.xlu0 %v978, 16
    %v1105 = vpop.permute.xlu0 %1104
    %1106 = vrot.lane.b32.xlu0 %v982, 16
    %v1107 = vpop.permute.xlu0 %1106
    %1108 = vrot.lane.b32.xlu0 %v986, 16
    %v1109 = vpop.permute.xlu0 %1108
    %1110 = vrot.lane.b32.xlu0 %v990, 16
    %v1111 = vpop.permute.xlu0 %1110
    %1112 = vrot.lane.b32.xlu0 %v979, 16
    %v1113 = vpop.permute.xlu0 %1112
    %1114 = vrot.lane.b32.xlu0 %v983, 16
    %v1115 = vpop.permute.xlu0 %1114
    %1116 = vrot.lane.b32.xlu0 %v987, 16
    %v1117 = vpop.permute.xlu0 %1116
    %1118 = vrot.lane.b32.xlu0 %v991, 16
    %v1119 = vpop.permute.xlu0 %1118
    %v1120 = vsel %vm198, %v1105, %v1113
    %v1121 = vsel %vm198, %v1107, %v1115
    %v1122 = vsel %vm198, %v1109, %v1117
    %v1123 = vsel %vm198, %v1111, %v1119
    %v1124 = vsel %vm198, %v1097, %v1105
    %v1125 = vsel %vm198, %v1099, %v1107
    %v1126 = vsel %vm198, %v1101, %v1109
    %v1127 = vsel %vm198, %v1103, %v1111
    %v1128 = vsel %vm198, %v1089, %v1097
    %v1129 = vsel %vm198, %v1091, %v1099
    %v1130 = vsel %vm198, %v1093, %v1101
    %v1131 = vsel %vm198, %v1095, %v1103
    %v1132 = vsel %vm198, %v1113, %v1089
    %v1133 = vsel %vm198, %v1115, %v1091
    %v1134 = vsel %vm198, %v1117, %v1093
    %v1135 = vsel %vm198, %v1119, %v1095
    %v1136 = vpack.c.bf16 %v1128, %v1132
    %v1137 = vpack.c.bf16 %v1120, %v1124
    %v1138 = vpack.c.bf16 %v1129, %v1133
    %v1139 = vpack.c.bf16 %v1121, %v1125
    %v1140 = vpack.c.bf16 %v1130, %v1134
    %v1141 = vpack.c.bf16 %v1122, %v1126
    %v1142 = vpack.c.bf16 %v1131, %v1135
    %v1143 = vpack.c.bf16 %v1123, %v1127
    %v1144 = vunpack.c.l.bf16 %v1136
    %v1145 = vunpack.c.h.bf16 %v1136
    %v1146 = vunpack.c.l.bf16 %v1137
    %v1147 = vunpack.c.h.bf16 %v1137
    %v1148 = vunpack.c.l.bf16 %v1138
    %v1149 = vunpack.c.h.bf16 %v1138
    %v1150 = vunpack.c.l.bf16 %v1139
    %v1151 = vunpack.c.h.bf16 %v1139
    %v1152 = vunpack.c.l.bf16 %v1140
    %v1153 = vunpack.c.h.bf16 %v1140
    %v1154 = vunpack.c.l.bf16 %v1141
    %v1155 = vunpack.c.h.bf16 %v1141
    %v1156 = vunpack.c.l.bf16 %v1142
    %v1157 = vunpack.c.h.bf16 %v1142
    %v1158 = vunpack.c.l.bf16 %v1143
    %v1159 = vunpack.c.h.bf16 %v1143
    %v1160 = vmul.f32 %v1144, %v235
    %v1161 = vmul.f32 %v1145, %v236
    %v1162 = vmul.f32 %v1146, %v237
    %v1163 = vmul.f32 %v1147, %v238
    %v1164 = vmul.f32 %v1148, %v235
    %v1165 = vmul.f32 %v1149, %v236
    %v1166 = vmul.f32 %v1150, %v237
    %v1167 = vmul.f32 %v1151, %v238
    %v1168 = vmul.f32 %v1152, %v235
    %v1169 = vmul.f32 %v1153, %v236
    %v1170 = vmul.f32 %v1154, %v237
    %v1171 = vmul.f32 %v1155, %v238
    %v1172 = vmul.f32 %v1156, %v235
    %v1173 = vmul.f32 %v1157, %v236
    %v1174 = vmul.f32 %v1158, %v237
    %v1175 = vmul.f32 %v1159, %v238
    %v1176 = vpack.c.bf16 %v1161, %v1160
    %v1177 = vpack.c.bf16 %v1163, %v1162
    %v1178 = vpack.c.bf16 %v1165, %v1164
    %v1179 = vpack.c.bf16 %v1167, %v1166
    %v1180 = vpack.c.bf16 %v1169, %v1168
    %v1181 = vpack.c.bf16 %v1171, %v1170
    %v1182 = vpack.c.bf16 %v1173, %v1172
    %v1183 = vpack.c.bf16 %v1175, %v1174
    %1184 = vrot.lane.b32.xlu0 %v976, 15
    %v1185 = vpop.permute.xlu0 %1184
    %1186 = vrot.lane.b32.xlu0 %v980, 15
    %v1187 = vpop.permute.xlu0 %1186
    %1188 = vrot.lane.b32.xlu0 %v984, 15
    %v1189 = vpop.permute.xlu0 %1188
    %1190 = vrot.lane.b32.xlu0 %v988, 15
    %v1191 = vpop.permute.xlu0 %1190
    %1192 = vrot.lane.b32.xlu0 %v977, 15
    %v1193 = vpop.permute.xlu0 %1192
    %1194 = vrot.lane.b32.xlu0 %v981, 15
    %v1195 = vpop.permute.xlu0 %1194
    %1196 = vrot.lane.b32.xlu0 %v985, 15
    %v1197 = vpop.permute.xlu0 %1196
    %1198 = vrot.lane.b32.xlu0 %v989, 15
    %v1199 = vpop.permute.xlu0 %1198
    %1200 = vrot.lane.b32.xlu0 %v978, 15
    %v1201 = vpop.permute.xlu0 %1200
    %1202 = vrot.lane.b32.xlu0 %v982, 15
    %v1203 = vpop.permute.xlu0 %1202
    %1204 = vrot.lane.b32.xlu0 %v986, 15
    %v1205 = vpop.permute.xlu0 %1204
    %1206 = vrot.lane.b32.xlu0 %v990, 15
    %v1207 = vpop.permute.xlu0 %1206
    %1208 = vrot.lane.b32.xlu0 %v979, 15
    %v1209 = vpop.permute.xlu0 %1208
    %1210 = vrot.lane.b32.xlu0 %v983, 15
    %v1211 = vpop.permute.xlu0 %1210
    %1212 = vrot.lane.b32.xlu0 %v987, 15
    %v1213 = vpop.permute.xlu0 %1212
    %1214 = vrot.lane.b32.xlu0 %v991, 15
    %v1215 = vpop.permute.xlu0 %1214
    %v1216 = vsel %vm267, %v1201, %v1209
    %v1217 = vsel %vm267, %v1203, %v1211
    %v1218 = vsel %vm267, %v1205, %v1213
    %v1219 = vsel %vm267, %v1207, %v1215
    %v1220 = vsel %vm267, %v1193, %v1201
    %v1221 = vsel %vm267, %v1195, %v1203
    %v1222 = vsel %vm267, %v1197, %v1205
    %v1223 = vsel %vm267, %v1199, %v1207
    %v1224 = vsel %vm267, %v1185, %v1193
    %v1225 = vsel %vm267, %v1187, %v1195
    %v1226 = vsel %vm267, %v1189, %v1197
    %v1227 = vsel %vm267, %v1191, %v1199
    %v1228 = vsel %vm267, %v1209, %v1185
    %v1229 = vsel %vm267, %v1211, %v1187
    %v1230 = vsel %vm267, %v1213, %v1189
    %v1231 = vsel %vm267, %v1215, %v1191
    %v1232 = vpack.c.bf16 %v1224, %v1228
    %v1233 = vpack.c.bf16 %v1216, %v1220
    %v1234 = vpack.c.bf16 %v1225, %v1229
    %v1235 = vpack.c.bf16 %v1217, %v1221
    %v1236 = vpack.c.bf16 %v1226, %v1230
    %v1237 = vpack.c.bf16 %v1218, %v1222
    %v1238 = vpack.c.bf16 %v1227, %v1231
    %v1239 = vpack.c.bf16 %v1219, %v1223
    %v1240 = vunpack.c.l.bf16 %v1232
    %v1241 = vunpack.c.h.bf16 %v1232
    %v1242 = vunpack.c.l.bf16 %v1233
    %v1243 = vunpack.c.h.bf16 %v1233
    %v1244 = vunpack.c.l.bf16 %v1234
    %v1245 = vunpack.c.h.bf16 %v1234
    %v1246 = vunpack.c.l.bf16 %v1235
    %v1247 = vunpack.c.h.bf16 %v1235
    %v1248 = vunpack.c.l.bf16 %v1236
    %v1249 = vunpack.c.h.bf16 %v1236
    %v1250 = vunpack.c.l.bf16 %v1237
    %v1251 = vunpack.c.h.bf16 %v1237
    %v1252 = vunpack.c.l.bf16 %v1238
    %v1253 = vunpack.c.h.bf16 %v1238
    %v1254 = vunpack.c.l.bf16 %v1239
    %v1255 = vunpack.c.h.bf16 %v1239
    %v1256 = vmul.f32 %v1240, %v292
    %v1257 = vmul.f32 %v1241, %v293
    %v1258 = vmul.f32 %v1242, %v294
    %v1259 = vmul.f32 %v1243, %v295
    %v1260 = vmul.f32 %v1244, %v292
    %v1261 = vmul.f32 %v1245, %v293
    %v1262 = vmul.f32 %v1246, %v294
    %v1263 = vmul.f32 %v1247, %v295
    %v1264 = vmul.f32 %v1248, %v292
    %v1265 = vmul.f32 %v1249, %v293
    %v1266 = vmul.f32 %v1250, %v294
    %v1267 = vmul.f32 %v1251, %v295
    %v1268 = vmul.f32 %v1252, %v292
    %v1269 = vmul.f32 %v1253, %v293
    %v1270 = vmul.f32 %v1254, %v294
    %v1271 = vmul.f32 %v1255, %v295
    %v1272 = vpack.c.bf16 %v1257, %v1256
    %v1273 = vpack.c.bf16 %v1259, %v1258
    %v1274 = vpack.c.bf16 %v1261, %v1260
    %v1275 = vpack.c.bf16 %v1263, %v1262
    %v1276 = vpack.c.bf16 %v1265, %v1264
    %v1277 = vpack.c.bf16 %v1267, %v1266
    %v1278 = vpack.c.bf16 %v1269, %v1268
    %v1279 = vpack.c.bf16 %v1271, %v1270
    %1280 = vrot.lane.b32.xlu0 %v976, 1
    %v1281 = vpop.permute.xlu0 %1280
    %1282 = vrot.lane.b32.xlu0 %v980, 1
    %v1283 = vpop.permute.xlu0 %1282
    %1284 = vrot.lane.b32.xlu0 %v984, 1
    %v1285 = vpop.permute.xlu0 %1284
    %1286 = vrot.lane.b32.xlu0 %v988, 1
    %v1287 = vpop.permute.xlu0 %1286
    %1288 = vrot.lane.b32.xlu0 %v977, 1
    %v1289 = vpop.permute.xlu0 %1288
    %1290 = vrot.lane.b32.xlu0 %v981, 1
    %v1291 = vpop.permute.xlu0 %1290
    %1292 = vrot.lane.b32.xlu0 %v985, 1
    %v1293 = vpop.permute.xlu0 %1292
    %1294 = vrot.lane.b32.xlu0 %v989, 1
    %v1295 = vpop.permute.xlu0 %1294
    %1296 = vrot.lane.b32.xlu0 %v978, 1
    %v1297 = vpop.permute.xlu0 %1296
    %1298 = vrot.lane.b32.xlu0 %v982, 1
    %v1299 = vpop.permute.xlu0 %1298
    %1300 = vrot.lane.b32.xlu0 %v986, 1
    %v1301 = vpop.permute.xlu0 %1300
    %1302 = vrot.lane.b32.xlu0 %v990, 1
    %v1303 = vpop.permute.xlu0 %1302
    %1304 = vrot.lane.b32.xlu0 %v979, 1
    %v1305 = vpop.permute.xlu0 %1304
    %1306 = vrot.lane.b32.xlu0 %v983, 1
    %v1307 = vpop.permute.xlu0 %1306
    %1308 = vrot.lane.b32.xlu0 %v987, 1
    %v1309 = vpop.permute.xlu0 %1308
    %1310 = vrot.lane.b32.xlu0 %v991, 1
    %v1311 = vpop.permute.xlu0 %1310
    %v1312 = vsel %vm324, %v1297, %v1305
    %v1313 = vsel %vm324, %v1299, %v1307
    %v1314 = vsel %vm324, %v1301, %v1309
    %v1315 = vsel %vm324, %v1303, %v1311
    %v1316 = vsel %vm324, %v1289, %v1297
    %v1317 = vsel %vm324, %v1291, %v1299
    %v1318 = vsel %vm324, %v1293, %v1301
    %v1319 = vsel %vm324, %v1295, %v1303
    %v1320 = vsel %vm324, %v1281, %v1289
    %v1321 = vsel %vm324, %v1283, %v1291
    %v1322 = vsel %vm324, %v1285, %v1293
    %v1323 = vsel %vm324, %v1287, %v1295
    %v1324 = vsel %vm324, %v1305, %v1281
    %v1325 = vsel %vm324, %v1307, %v1283
    %v1326 = vsel %vm324, %v1309, %v1285
    %v1327 = vsel %vm324, %v1311, %v1287
    %v1328 = vpack.c.bf16 %v1320, %v1324
    %v1329 = vpack.c.bf16 %v1312, %v1316
    %v1330 = vpack.c.bf16 %v1321, %v1325
    %v1331 = vpack.c.bf16 %v1313, %v1317
    %v1332 = vpack.c.bf16 %v1322, %v1326
    %v1333 = vpack.c.bf16 %v1314, %v1318
    %v1334 = vpack.c.bf16 %v1323, %v1327
    %v1335 = vpack.c.bf16 %v1315, %v1319
    %v1336 = vunpack.c.l.bf16 %v1328
    %v1337 = vunpack.c.h.bf16 %v1328
    %v1338 = vunpack.c.l.bf16 %v1329
    %v1339 = vunpack.c.h.bf16 %v1329
    %v1340 = vunpack.c.l.bf16 %v1330
    %v1341 = vunpack.c.h.bf16 %v1330
    %v1342 = vunpack.c.l.bf16 %v1331
    %v1343 = vunpack.c.h.bf16 %v1331
    %v1344 = vunpack.c.l.bf16 %v1332
    %v1345 = vunpack.c.h.bf16 %v1332
    %v1346 = vunpack.c.l.bf16 %v1333
    %v1347 = vunpack.c.h.bf16 %v1333
    %v1348 = vunpack.c.l.bf16 %v1334
    %v1349 = vunpack.c.h.bf16 %v1334
    %v1350 = vunpack.c.l.bf16 %v1335
    %v1351 = vunpack.c.h.bf16 %v1335
    %v1352 = vmul.f32 %v1336, %v349
    %v1353 = vmul.f32 %v1337, %v350
    %v1354 = vmul.f32 %v1338, %v351
    %v1355 = vmul.f32 %v1339, %v352
    %v1356 = vmul.f32 %v1340, %v349
    %v1357 = vmul.f32 %v1341, %v350
    %v1358 = vmul.f32 %v1342, %v351
    %v1359 = vmul.f32 %v1343, %v352
    %v1360 = vmul.f32 %v1344, %v349
    %v1361 = vmul.f32 %v1345, %v350
    %v1362 = vmul.f32 %v1346, %v351
    %v1363 = vmul.f32 %v1347, %v352
    %v1364 = vmul.f32 %v1348, %v349
    %v1365 = vmul.f32 %v1349, %v350
    %v1366 = vmul.f32 %v1350, %v351
    %v1367 = vmul.f32 %v1351, %v352
    %v1368 = vpack.c.bf16 %v1353, %v1352
    %v1369 = vpack.c.bf16 %v1355, %v1354
    %v1370 = vpack.c.bf16 %v1357, %v1356
    %v1371 = vpack.c.bf16 %v1359, %v1358
    %v1372 = vpack.c.bf16 %v1361, %v1360
    %v1373 = vpack.c.bf16 %v1363, %v1362
    %v1374 = vpack.c.bf16 %v1365, %v1364
    %v1375 = vpack.c.bf16 %v1367, %v1366
    %v1376 = vpack.c.bf16 %v977, %v976
    %v1377 = vpack.c.bf16 %v979, %v978
    %v1378 = vpack.c.bf16 %v981, %v980
    %v1379 = vpack.c.bf16 %v983, %v982
    %v1380 = vpack.c.bf16 %v985, %v984
    %v1381 = vpack.c.bf16 %v987, %v986
    %v1382 = vpack.c.bf16 %v989, %v988
    %v1383 = vpack.c.bf16 %v991, %v990
    %1384 = vrot.lane.b32.xlu0 %v976, 127
    %v1385 = vpop.permute.xlu0 %1384
    %1386 = vrot.lane.b32.xlu0 %v980, 127
    %v1387 = vpop.permute.xlu0 %1386
    %1388 = vrot.lane.b32.xlu0 %v984, 127
    %v1389 = vpop.permute.xlu0 %1388
    %1390 = vrot.lane.b32.xlu0 %v988, 127
    %v1391 = vpop.permute.xlu0 %1390
    %1392 = vrot.lane.b32.xlu0 %v977, 127
    %v1393 = vpop.permute.xlu0 %1392
    %1394 = vrot.lane.b32.xlu0 %v981, 127
    %v1395 = vpop.permute.xlu0 %1394
    %1396 = vrot.lane.b32.xlu0 %v985, 127
    %v1397 = vpop.permute.xlu0 %1396
    %1398 = vrot.lane.b32.xlu0 %v989, 127
    %v1399 = vpop.permute.xlu0 %1398
    %1400 = vrot.lane.b32.xlu0 %v978, 127
    %v1401 = vpop.permute.xlu0 %1400
    %1402 = vrot.lane.b32.xlu0 %v982, 127
    %v1403 = vpop.permute.xlu0 %1402
    %1404 = vrot.lane.b32.xlu0 %v986, 127
    %v1405 = vpop.permute.xlu0 %1404
    %1406 = vrot.lane.b32.xlu0 %v990, 127
    %v1407 = vpop.permute.xlu0 %1406
    %1408 = vrot.lane.b32.xlu0 %v979, 127
    %v1409 = vpop.permute.xlu0 %1408
    %1410 = vrot.lane.b32.xlu0 %v983, 127
    %v1411 = vpop.permute.xlu0 %1410
    %1412 = vrot.lane.b32.xlu0 %v987, 127
    %v1413 = vpop.permute.xlu0 %1412
    %1414 = vrot.lane.b32.xlu0 %v991, 127
    %v1415 = vpop.permute.xlu0 %1414
    %v1416 = vsel %vm381, %v1401, %v1409
    %v1417 = vsel %vm381, %v1403, %v1411
    %v1418 = vsel %vm381, %v1405, %v1413
    %v1419 = vsel %vm381, %v1407, %v1415
    %v1420 = vsel %vm381, %v1393, %v1401
    %v1421 = vsel %vm381, %v1395, %v1403
    %v1422 = vsel %vm381, %v1397, %v1405
    %v1423 = vsel %vm381, %v1399, %v1407
    %v1424 = vsel %vm381, %v1385, %v1393
    %v1425 = vsel %vm381, %v1387, %v1395
    %v1426 = vsel %vm381, %v1389, %v1397
    %v1427 = vsel %vm381, %v1391, %v1399
    %v1428 = vsel %vm381, %v1409, %v1385
    %v1429 = vsel %vm381, %v1411, %v1387
    %v1430 = vsel %vm381, %v1413, %v1389
    %v1431 = vsel %vm381, %v1415, %v1391
    %v1432 = vpack.c.bf16 %v1420, %v1424
    %v1433 = vpack.c.bf16 %v1428, %v1416
    %v1434 = vpack.c.bf16 %v1421, %v1425
    %v1435 = vpack.c.bf16 %v1429, %v1417
    %v1436 = vpack.c.bf16 %v1422, %v1426
    %v1437 = vpack.c.bf16 %v1430, %v1418
    %v1438 = vpack.c.bf16 %v1423, %v1427
    %v1439 = vpack.c.bf16 %v1431, %v1419
    %v1440 = vunpack.c.l.bf16 %v1432
    %v1441 = vunpack.c.h.bf16 %v1432
    %v1442 = vunpack.c.l.bf16 %v1433
    %v1443 = vunpack.c.h.bf16 %v1433
    %v1444 = vunpack.c.l.bf16 %v1434
    %v1445 = vunpack.c.h.bf16 %v1434
    %v1446 = vunpack.c.l.bf16 %v1435
    %v1447 = vunpack.c.h.bf16 %v1435
    %v1448 = vunpack.c.l.bf16 %v1436
    %v1449 = vunpack.c.h.bf16 %v1436
    %v1450 = vunpack.c.l.bf16 %v1437
    %v1451 = vunpack.c.h.bf16 %v1437
    %v1452 = vunpack.c.l.bf16 %v1438
    %v1453 = vunpack.c.h.bf16 %v1438
    %v1454 = vunpack.c.l.bf16 %v1439
    %v1455 = vunpack.c.h.bf16 %v1439
    %v1456 = vmul.f32 %v1440, %v406
    %v1457 = vmul.f32 %v1441, %v407
    %v1458 = vmul.f32 %v1442, %v408
    %v1459 = vmul.f32 %v1443, %v409
    %v1460 = vmul.f32 %v1444, %v406
    %v1461 = vmul.f32 %v1445, %v407
    %v1462 = vmul.f32 %v1446, %v408
    %v1463 = vmul.f32 %v1447, %v409
    %v1464 = vmul.f32 %v1448, %v406
    %v1465 = vmul.f32 %v1449, %v407
    %v1466 = vmul.f32 %v1450, %v408
    %v1467 = vmul.f32 %v1451, %v409
    %v1468 = vmul.f32 %v1452, %v406
    %v1469 = vmul.f32 %v1453, %v407
    %v1470 = vmul.f32 %v1454, %v408
    %v1471 = vmul.f32 %v1455, %v409
    %v1472 = vpack.c.bf16 %v1457, %v1456
    %v1473 = vpack.c.bf16 %v1459, %v1458
    %v1474 = vpack.c.bf16 %v1461, %v1460
    %v1475 = vpack.c.bf16 %v1463, %v1462
    %v1476 = vpack.c.bf16 %v1465, %v1464
    %v1477 = vpack.c.bf16 %v1467, %v1466
    %v1478 = vpack.c.bf16 %v1469, %v1468
    %v1479 = vpack.c.bf16 %v1471, %v1470
    %1480 = vrot.lane.b32.xlu0 %v976, 113
    %v1481 = vpop.permute.xlu0 %1480
    %1482 = vrot.lane.b32.xlu0 %v980, 113
    %v1483 = vpop.permute.xlu0 %1482
    %1484 = vrot.lane.b32.xlu0 %v984, 113
    %v1485 = vpop.permute.xlu0 %1484
    %1486 = vrot.lane.b32.xlu0 %v988, 113
    %v1487 = vpop.permute.xlu0 %1486
    %1488 = vrot.lane.b32.xlu0 %v977, 113
    %v1489 = vpop.permute.xlu0 %1488
    %1490 = vrot.lane.b32.xlu0 %v981, 113
    %v1491 = vpop.permute.xlu0 %1490
    %1492 = vrot.lane.b32.xlu0 %v985, 113
    %v1493 = vpop.permute.xlu0 %1492
    %1494 = vrot.lane.b32.xlu0 %v989, 113
    %v1495 = vpop.permute.xlu0 %1494
    %1496 = vrot.lane.b32.xlu0 %v978, 113
    %v1497 = vpop.permute.xlu0 %1496
    %1498 = vrot.lane.b32.xlu0 %v982, 113
    %v1499 = vpop.permute.xlu0 %1498
    %1500 = vrot.lane.b32.xlu0 %v986, 113
    %v1501 = vpop.permute.xlu0 %1500
    %1502 = vrot.lane.b32.xlu0 %v990, 113
    %v1503 = vpop.permute.xlu0 %1502
    %1504 = vrot.lane.b32.xlu0 %v979, 113
    %v1505 = vpop.permute.xlu0 %1504
    %1506 = vrot.lane.b32.xlu0 %v983, 113
    %v1507 = vpop.permute.xlu0 %1506
    %1508 = vrot.lane.b32.xlu0 %v987, 113
    %v1509 = vpop.permute.xlu0 %1508
    %1510 = vrot.lane.b32.xlu0 %v991, 113
    %v1511 = vpop.permute.xlu0 %1510
    %v1512 = vsel %vm438, %v1497, %v1505
    %v1513 = vsel %vm438, %v1499, %v1507
    %v1514 = vsel %vm438, %v1501, %v1509
    %v1515 = vsel %vm438, %v1503, %v1511
    %v1516 = vsel %vm438, %v1489, %v1497
    %v1517 = vsel %vm438, %v1491, %v1499
    %v1518 = vsel %vm438, %v1493, %v1501
    %v1519 = vsel %vm438, %v1495, %v1503
    %v1520 = vsel %vm438, %v1481, %v1489
    %v1521 = vsel %vm438, %v1483, %v1491
    %v1522 = vsel %vm438, %v1485, %v1493
    %v1523 = vsel %vm438, %v1487, %v1495
    %v1524 = vsel %vm438, %v1505, %v1481
    %v1525 = vsel %vm438, %v1507, %v1483
    %v1526 = vsel %vm438, %v1509, %v1485
    %v1527 = vsel %vm438, %v1511, %v1487
    %v1528 = vpack.c.bf16 %v1516, %v1520
    %v1529 = vpack.c.bf16 %v1524, %v1512
    %v1530 = vpack.c.bf16 %v1517, %v1521
    %v1531 = vpack.c.bf16 %v1525, %v1513
    %v1532 = vpack.c.bf16 %v1518, %v1522
    %v1533 = vpack.c.bf16 %v1526, %v1514
    %v1534 = vpack.c.bf16 %v1519, %v1523
    %v1535 = vpack.c.bf16 %v1527, %v1515
    %v1536 = vunpack.c.l.bf16 %v1528
    %v1537 = vunpack.c.h.bf16 %v1528
    %v1538 = vunpack.c.l.bf16 %v1529
    %v1539 = vunpack.c.h.bf16 %v1529
    %v1540 = vunpack.c.l.bf16 %v1530
    %v1541 = vunpack.c.h.bf16 %v1530
    %v1542 = vunpack.c.l.bf16 %v1531
    %v1543 = vunpack.c.h.bf16 %v1531
    %v1544 = vunpack.c.l.bf16 %v1532
    %v1545 = vunpack.c.h.bf16 %v1532
    %v1546 = vunpack.c.l.bf16 %v1533
    %v1547 = vunpack.c.h.bf16 %v1533
    %v1548 = vunpack.c.l.bf16 %v1534
    %v1549 = vunpack.c.h.bf16 %v1534
    %v1550 = vunpack.c.l.bf16 %v1535
    %v1551 = vunpack.c.h.bf16 %v1535
    %v1552 = vmul.f32 %v1536, %v463
    %v1553 = vmul.f32 %v1537, %v464
    %v1554 = vmul.f32 %v1538, %v465
    %v1555 = vmul.f32 %v1539, %v466
    %v1556 = vmul.f32 %v1540, %v463
    %v1557 = vmul.f32 %v1541, %v464
    %v1558 = vmul.f32 %v1542, %v465
    %v1559 = vmul.f32 %v1543, %v466
    %v1560 = vmul.f32 %v1544, %v463
    %v1561 = vmul.f32 %v1545, %v464
    %v1562 = vmul.f32 %v1546, %v465
    %v1563 = vmul.f32 %v1547, %v466
    %v1564 = vmul.f32 %v1548, %v463
    %v1565 = vmul.f32 %v1549, %v464
    %v1566 = vmul.f32 %v1550, %v465
    %v1567 = vmul.f32 %v1551, %v466
    %v1568 = vpack.c.bf16 %v1553, %v1552
    %v1569 = vpack.c.bf16 %v1555, %v1554
    %v1570 = vpack.c.bf16 %v1557, %v1556
    %v1571 = vpack.c.bf16 %v1559, %v1558
    %v1572 = vpack.c.bf16 %v1561, %v1560
    %v1573 = vpack.c.bf16 %v1563, %v1562
    %v1574 = vpack.c.bf16 %v1565, %v1564
    %v1575 = vpack.c.bf16 %v1567, %v1566
    %1576 = vrot.lane.b32.xlu0 %v976, 112
    %v1577 = vpop.permute.xlu0 %1576
    %1578 = vrot.lane.b32.xlu0 %v980, 112
    %v1579 = vpop.permute.xlu0 %1578
    %1580 = vrot.lane.b32.xlu0 %v984, 112
    %v1581 = vpop.permute.xlu0 %1580
    %1582 = vrot.lane.b32.xlu0 %v988, 112
    %v1583 = vpop.permute.xlu0 %1582
    %1584 = vrot.lane.b32.xlu0 %v977, 112
    %v1585 = vpop.permute.xlu0 %1584
    %1586 = vrot.lane.b32.xlu0 %v981, 112
    %v1587 = vpop.permute.xlu0 %1586
    %1588 = vrot.lane.b32.xlu0 %v985, 112
    %v1589 = vpop.permute.xlu0 %1588
    %1590 = vrot.lane.b32.xlu0 %v989, 112
    %v1591 = vpop.permute.xlu0 %1590
    %1592 = vrot.lane.b32.xlu0 %v978, 112
    %v1593 = vpop.permute.xlu0 %1592
    %1594 = vrot.lane.b32.xlu0 %v982, 112
    %v1595 = vpop.permute.xlu0 %1594
    %1596 = vrot.lane.b32.xlu0 %v986, 112
    %v1597 = vpop.permute.xlu0 %1596
    %1598 = vrot.lane.b32.xlu0 %v990, 112
    %v1599 = vpop.permute.xlu0 %1598
    %1600 = vrot.lane.b32.xlu0 %v979, 112
    %v1601 = vpop.permute.xlu0 %1600
    %1602 = vrot.lane.b32.xlu0 %v983, 112
    %v1603 = vpop.permute.xlu0 %1602
    %1604 = vrot.lane.b32.xlu0 %v987, 112
    %v1605 = vpop.permute.xlu0 %1604
    %1606 = vrot.lane.b32.xlu0 %v991, 112
    %v1607 = vpop.permute.xlu0 %1606
    %v1608 = vsel %vm495, %v1593, %v1601
    %v1609 = vsel %vm495, %v1595, %v1603
    %v1610 = vsel %vm495, %v1597, %v1605
    %v1611 = vsel %vm495, %v1599, %v1607
    %v1612 = vsel %vm495, %v1585, %v1593
    %v1613 = vsel %vm495, %v1587, %v1595
    %v1614 = vsel %vm495, %v1589, %v1597
    %v1615 = vsel %vm495, %v1591, %v1599
    %v1616 = vsel %vm495, %v1577, %v1585
    %v1617 = vsel %vm495, %v1579, %v1587
    %v1618 = vsel %vm495, %v1581, %v1589
    %v1619 = vsel %vm495, %v1583, %v1591
    %v1620 = vsel %vm495, %v1601, %v1577
    %v1621 = vsel %vm495, %v1603, %v1579
    %v1622 = vsel %vm495, %v1605, %v1581
    %v1623 = vsel %vm495, %v1607, %v1583
    %v1624 = vpack.c.bf16 %v1612, %v1616
    %v1625 = vpack.c.bf16 %v1620, %v1608
    %v1626 = vpack.c.bf16 %v1613, %v1617
    %v1627 = vpack.c.bf16 %v1621, %v1609
    %v1628 = vpack.c.bf16 %v1614, %v1618
    %v1629 = vpack.c.bf16 %v1622, %v1610
    %v1630 = vpack.c.bf16 %v1615, %v1619
    %v1631 = vpack.c.bf16 %v1623, %v1611
    %v1632 = vunpack.c.l.bf16 %v1624
    %v1633 = vunpack.c.h.bf16 %v1624
    %v1634 = vunpack.c.l.bf16 %v1625
    %v1635 = vunpack.c.h.bf16 %v1625
    %v1636 = vunpack.c.l.bf16 %v1626
    %v1637 = vunpack.c.h.bf16 %v1626
    %v1638 = vunpack.c.l.bf16 %v1627
    %v1639 = vunpack.c.h.bf16 %v1627
    %v1640 = vunpack.c.l.bf16 %v1628
    %v1641 = vunpack.c.h.bf16 %v1628
    %v1642 = vunpack.c.l.bf16 %v1629
    %v1643 = vunpack.c.h.bf16 %v1629
    %v1644 = vunpack.c.l.bf16 %v1630
    %v1645 = vunpack.c.h.bf16 %v1630
    %v1646 = vunpack.c.l.bf16 %v1631
    %v1647 = vunpack.c.h.bf16 %v1631
    %v1648 = vmul.f32 %v1632, %v520
    %v1649 = vmul.f32 %v1633, %v521
    %v1650 = vmul.f32 %v1634, %v522
    %v1651 = vmul.f32 %v1635, %v523
    %v1652 = vmul.f32 %v1636, %v520
    %v1653 = vmul.f32 %v1637, %v521
    %v1654 = vmul.f32 %v1638, %v522
    %v1655 = vmul.f32 %v1639, %v523
    %v1656 = vmul.f32 %v1640, %v520
    %v1657 = vmul.f32 %v1641, %v521
    %v1658 = vmul.f32 %v1642, %v522
    %v1659 = vmul.f32 %v1643, %v523
    %v1660 = vmul.f32 %v1644, %v520
    %v1661 = vmul.f32 %v1645, %v521
    %v1662 = vmul.f32 %v1646, %v522
    %v1663 = vmul.f32 %v1647, %v523
    %v1664 = vpack.c.bf16 %v1649, %v1648
    %v1665 = vpack.c.bf16 %v1651, %v1650
    %v1666 = vpack.c.bf16 %v1653, %v1652
    %v1667 = vpack.c.bf16 %v1655, %v1654
    %v1668 = vpack.c.bf16 %v1657, %v1656
    %v1669 = vpack.c.bf16 %v1659, %v1658
    %v1670 = vpack.c.bf16 %v1661, %v1660
    %v1671 = vpack.c.bf16 %v1663, %v1662
    %1672 = vrot.lane.b32.xlu0 %v976, 111
    %v1673 = vpop.permute.xlu0 %1672
    %1674 = vrot.lane.b32.xlu0 %v980, 111
    %v1675 = vpop.permute.xlu0 %1674
    %1676 = vrot.lane.b32.xlu0 %v984, 111
    %v1677 = vpop.permute.xlu0 %1676
    %1678 = vrot.lane.b32.xlu0 %v988, 111
    %v1679 = vpop.permute.xlu0 %1678
    %1680 = vrot.lane.b32.xlu0 %v977, 111
    %v1681 = vpop.permute.xlu0 %1680
    %1682 = vrot.lane.b32.xlu0 %v981, 111
    %v1683 = vpop.permute.xlu0 %1682
    %1684 = vrot.lane.b32.xlu0 %v985, 111
    %v1685 = vpop.permute.xlu0 %1684
    %1686 = vrot.lane.b32.xlu0 %v989, 111
    %v1687 = vpop.permute.xlu0 %1686
    %1688 = vrot.lane.b32.xlu0 %v978, 111
    %v1689 = vpop.permute.xlu0 %1688
    %1690 = vrot.lane.b32.xlu0 %v982, 111
    %v1691 = vpop.permute.xlu0 %1690
    %1692 = vrot.lane.b32.xlu0 %v986, 111
    %v1693 = vpop.permute.xlu0 %1692
    %1694 = vrot.lane.b32.xlu0 %v990, 111
    %v1695 = vpop.permute.xlu0 %1694
    %1696 = vrot.lane.b32.xlu0 %v979, 111
    %v1697 = vpop.permute.xlu0 %1696
    %1698 = vrot.lane.b32.xlu0 %v983, 111
    %v1699 = vpop.permute.xlu0 %1698
    %1700 = vrot.lane.b32.xlu0 %v987, 111
    %v1701 = vpop.permute.xlu0 %1700
    %1702 = vrot.lane.b32.xlu0 %v991, 111
    %v1703 = vpop.permute.xlu0 %1702
    %v1704 = vsel %vm552, %v1689, %v1697
    %v1705 = vsel %vm552, %v1691, %v1699
    %v1706 = vsel %vm552, %v1693, %v1701
    %v1707 = vsel %vm552, %v1695, %v1703
    %v1708 = vsel %vm552, %v1681, %v1689
    %v1709 = vsel %vm552, %v1683, %v1691
    %v1710 = vsel %vm552, %v1685, %v1693
    %v1711 = vsel %vm552, %v1687, %v1695
    %v1712 = vsel %vm552, %v1673, %v1681
    %v1713 = vsel %vm552, %v1675, %v1683
    %v1714 = vsel %vm552, %v1677, %v1685
    %v1715 = vsel %vm552, %v1679, %v1687
    %v1716 = vsel %vm552, %v1697, %v1673
    %v1717 = vsel %vm552, %v1699, %v1675
    %v1718 = vsel %vm552, %v1701, %v1677
    %v1719 = vsel %vm552, %v1703, %v1679
    %v1720 = vpack.c.bf16 %v1708, %v1712
    %v1721 = vpack.c.bf16 %v1716, %v1704
    %v1722 = vpack.c.bf16 %v1709, %v1713
    %v1723 = vpack.c.bf16 %v1717, %v1705
    %v1724 = vpack.c.bf16 %v1710, %v1714
    %v1725 = vpack.c.bf16 %v1718, %v1706
    %v1726 = vpack.c.bf16 %v1711, %v1715
    %v1727 = vpack.c.bf16 %v1719, %v1707
    %v1728 = vunpack.c.l.bf16 %v1720
    %v1729 = vunpack.c.h.bf16 %v1720
    %v1730 = vunpack.c.l.bf16 %v1721
    %v1731 = vunpack.c.h.bf16 %v1721
    %v1732 = vunpack.c.l.bf16 %v1722
    %v1733 = vunpack.c.h.bf16 %v1722
    %v1734 = vunpack.c.l.bf16 %v1723
    %v1735 = vunpack.c.h.bf16 %v1723
    %v1736 = vunpack.c.l.bf16 %v1724
    %v1737 = vunpack.c.h.bf16 %v1724
    %v1738 = vunpack.c.l.bf16 %v1725
    %v1739 = vunpack.c.h.bf16 %v1725
    %v1740 = vunpack.c.l.bf16 %v1726
    %v1741 = vunpack.c.h.bf16 %v1726
    %v1742 = vunpack.c.l.bf16 %v1727
    %v1743 = vunpack.c.h.bf16 %v1727
    %v1744 = vmul.f32 %v1728, %v599
    %v1745 = vmul.f32 %v1729, %v600
    %v1746 = vmul.f32 %v1730, %v601
    %v1747 = vmul.f32 %v1731, %v602
    %v1748 = vmul.f32 %v1732, %v599
    %v1749 = vmul.f32 %v1733, %v600
    %v1750 = vmul.f32 %v1734, %v601
    %v1751 = vmul.f32 %v1735, %v602
    %v1752 = vmul.f32 %v1736, %v599
    %v1753 = vmul.f32 %v1737, %v600
    %v1754 = vmul.f32 %v1738, %v601
    %v1755 = vmul.f32 %v1739, %v602
    %v1756 = vmul.f32 %v1740, %v599
    %v1757 = vmul.f32 %v1741, %v600
    %v1758 = vmul.f32 %v1742, %v601
    %v1759 = vmul.f32 %v1743, %v602
    %v1760 = vpack.c.bf16 %v1745, %v1744
    %v1761 = vpack.c.bf16 %v1747, %v1746
    %v1762 = vpack.c.bf16 %v1749, %v1748
    %v1763 = vpack.c.bf16 %v1751, %v1750
    %v1764 = vpack.c.bf16 %v1753, %v1752
    %v1765 = vpack.c.bf16 %v1755, %v1754
    %v1766 = vpack.c.bf16 %v1757, %v1756
    %v1767 = vpack.c.bf16 %v1759, %v1758
    %v1776 = vunpack.c.l.b16 %v1080
    %v1777 = vunpack.c.h.b16 %v1080
    %v1778 = vunpack.c.l.b16 %v1081
    %v1779 = vunpack.c.h.b16 %v1081
    %v1780 = vunpack.c.l.b16 %v1082
    %v1781 = vunpack.c.h.b16 %v1082
    %v1782 = vunpack.c.l.b16 %v1083
    %v1783 = vunpack.c.h.b16 %v1083
    %v1784 = vunpack.c.l.b16 %v1084
    %v1785 = vunpack.c.h.b16 %v1084
    %v1786 = vunpack.c.l.b16 %v1085
    %v1787 = vunpack.c.h.b16 %v1085
    %v1788 = vunpack.c.l.b16 %v1086
    %v1789 = vunpack.c.h.b16 %v1086
    %v1790 = vunpack.c.l.b16 %v1087
    %v1791 = vunpack.c.h.b16 %v1087
    %v1792 = vpack.c.b16 %v1780, %v1776
    %v1793 = vpack.c.b16 %v1781, %v1777
    %v1794 = vpack.c.b16 %v1782, %v1778
    %v1795 = vpack.c.b16 %v1783, %v1779
    %v1796 = vpack.c.b16 %v1788, %v1784
    %v1797 = vpack.c.b16 %v1789, %v1785
    %v1798 = vpack.c.b16 %v1790, %v1786
    %v1799 = vpack.c.b16 %v1791, %v1787
    %v1816 = vunpack.c.l.b16 %v1176
    %v1817 = vunpack.c.h.b16 %v1176
    %v1818 = vunpack.c.l.b16 %v1177
    %v1819 = vunpack.c.h.b16 %v1177
    %v1820 = vunpack.c.l.b16 %v1178
    %v1821 = vunpack.c.h.b16 %v1178
    %v1822 = vunpack.c.l.b16 %v1179
    %v1823 = vunpack.c.h.b16 %v1179
    %v1824 = vunpack.c.l.b16 %v1180
    %v1825 = vunpack.c.h.b16 %v1180
    %v1826 = vunpack.c.l.b16 %v1181
    %v1827 = vunpack.c.h.b16 %v1181
    %v1828 = vunpack.c.l.b16 %v1182
    %v1829 = vunpack.c.h.b16 %v1182
    %v1830 = vunpack.c.l.b16 %v1183
    %v1831 = vunpack.c.h.b16 %v1183
    %v1832 = vpack.c.b16 %v1820, %v1816
    %v1833 = vpack.c.b16 %v1821, %v1817
    %v1834 = vpack.c.b16 %v1822, %v1818
    %v1835 = vpack.c.b16 %v1823, %v1819
    %v1836 = vpack.c.b16 %v1828, %v1824
    %v1837 = vpack.c.b16 %v1829, %v1825
    %v1838 = vpack.c.b16 %v1830, %v1826
    %v1839 = vpack.c.b16 %v1831, %v1827
    %v1856 = vunpack.c.l.b16 %v1272
    %v1857 = vunpack.c.h.b16 %v1272
    %v1858 = vunpack.c.l.b16 %v1273
    %v1859 = vunpack.c.h.b16 %v1273
    %v1860 = vunpack.c.l.b16 %v1274
    %v1861 = vunpack.c.h.b16 %v1274
    %v1862 = vunpack.c.l.b16 %v1275
    %v1863 = vunpack.c.h.b16 %v1275
    %v1864 = vunpack.c.l.b16 %v1276
    %v1865 = vunpack.c.h.b16 %v1276
    %v1866 = vunpack.c.l.b16 %v1277
    %v1867 = vunpack.c.h.b16 %v1277
    %v1868 = vunpack.c.l.b16 %v1278
    %v1869 = vunpack.c.h.b16 %v1278
    %v1870 = vunpack.c.l.b16 %v1279
    %v1871 = vunpack.c.h.b16 %v1279
    %v1872 = vpack.c.b16 %v1860, %v1856
    %v1873 = vpack.c.b16 %v1861, %v1857
    %v1874 = vpack.c.b16 %v1862, %v1858
    %v1875 = vpack.c.b16 %v1863, %v1859
    %v1876 = vpack.c.b16 %v1868, %v1864
    %v1877 = vpack.c.b16 %v1869, %v1865
    %v1878 = vpack.c.b16 %v1870, %v1866
    %v1879 = vpack.c.b16 %v1871, %v1867
    %v1896 = vunpack.c.l.b16 %v1368
    %v1897 = vunpack.c.h.b16 %v1368
    %v1898 = vunpack.c.l.b16 %v1369
    %v1899 = vunpack.c.h.b16 %v1369
    %v1900 = vunpack.c.l.b16 %v1370
    %v1901 = vunpack.c.h.b16 %v1370
    %v1902 = vunpack.c.l.b16 %v1371
    %v1903 = vunpack.c.h.b16 %v1371
    %v1904 = vunpack.c.l.b16 %v1372
    %v1905 = vunpack.c.h.b16 %v1372
    %v1906 = vunpack.c.l.b16 %v1373
    %v1907 = vunpack.c.h.b16 %v1373
    %v1908 = vunpack.c.l.b16 %v1374
    %v1909 = vunpack.c.h.b16 %v1374
    %v1910 = vunpack.c.l.b16 %v1375
    %v1911 = vunpack.c.h.b16 %v1375
    %v1912 = vpack.c.b16 %v1900, %v1896
    %v1913 = vpack.c.b16 %v1901, %v1897
    %v1914 = vpack.c.b16 %v1902, %v1898
    %v1915 = vpack.c.b16 %v1903, %v1899
    %v1916 = vpack.c.b16 %v1908, %v1904
    %v1917 = vpack.c.b16 %v1909, %v1905
    %v1918 = vpack.c.b16 %v1910, %v1906
    %v1919 = vpack.c.b16 %v1911, %v1907
    %v1936 = vunpack.c.l.b16 %v1376
    %v1937 = vunpack.c.h.b16 %v1376
    %v1938 = vunpack.c.l.b16 %v1377
    %v1939 = vunpack.c.h.b16 %v1377
    %v1940 = vunpack.c.l.b16 %v1378
    %v1941 = vunpack.c.h.b16 %v1378
    %v1942 = vunpack.c.l.b16 %v1379
    %v1943 = vunpack.c.h.b16 %v1379
    %v1944 = vunpack.c.l.b16 %v1380
    %v1945 = vunpack.c.h.b16 %v1380
    %v1946 = vunpack.c.l.b16 %v1381
    %v1947 = vunpack.c.h.b16 %v1381
    %v1948 = vunpack.c.l.b16 %v1382
    %v1949 = vunpack.c.h.b16 %v1382
    %v1950 = vunpack.c.l.b16 %v1383
    %v1951 = vunpack.c.h.b16 %v1383
    %v1952 = vpack.c.b16 %v1940, %v1936
    %v1953 = vpack.c.b16 %v1941, %v1937
    %v1954 = vpack.c.b16 %v1942, %v1938
    %v1955 = vpack.c.b16 %v1943, %v1939
    %v1956 = vpack.c.b16 %v1948, %v1944
    %v1957 = vpack.c.b16 %v1949, %v1945
    %v1958 = vpack.c.b16 %v1950, %v1946
    %v1959 = vpack.c.b16 %v1951, %v1947
    %v1976 = vunpack.c.l.b16 %v1472
    %v1977 = vunpack.c.h.b16 %v1472
    %v1978 = vunpack.c.l.b16 %v1473
    %v1979 = vunpack.c.h.b16 %v1473
    %v1980 = vunpack.c.l.b16 %v1474
    %v1981 = vunpack.c.h.b16 %v1474
    %v1982 = vunpack.c.l.b16 %v1475
    %v1983 = vunpack.c.h.b16 %v1475
    %v1984 = vunpack.c.l.b16 %v1476
    %v1985 = vunpack.c.h.b16 %v1476
    %v1986 = vunpack.c.l.b16 %v1477
    %v1987 = vunpack.c.h.b16 %v1477
    %v1988 = vunpack.c.l.b16 %v1478
    %v1989 = vunpack.c.h.b16 %v1478
    %v1990 = vunpack.c.l.b16 %v1479
    %v1991 = vunpack.c.h.b16 %v1479
    %v1992 = vpack.c.b16 %v1980, %v1976
    %v1993 = vpack.c.b16 %v1981, %v1977
    %v1994 = vpack.c.b16 %v1982, %v1978
    %v1995 = vpack.c.b16 %v1983, %v1979
    %v1996 = vpack.c.b16 %v1988, %v1984
    %v1997 = vpack.c.b16 %v1989, %v1985
    %v1998 = vpack.c.b16 %v1990, %v1986
    %v1999 = vpack.c.b16 %v1991, %v1987
    %v2016 = vunpack.c.l.b16 %v1568
    %v2017 = vunpack.c.h.b16 %v1568
    %v2018 = vunpack.c.l.b16 %v1569
    %v2019 = vunpack.c.h.b16 %v1569
    %v2020 = vunpack.c.l.b16 %v1570
    %v2021 = vunpack.c.h.b16 %v1570
    %v2022 = vunpack.c.l.b16 %v1571
    %v2023 = vunpack.c.h.b16 %v1571
    %v2024 = vunpack.c.l.b16 %v1572
    %v2025 = vunpack.c.h.b16 %v1572
    %v2026 = vunpack.c.l.b16 %v1573
    %v2027 = vunpack.c.h.b16 %v1573
    %v2028 = vunpack.c.l.b16 %v1574
    %v2029 = vunpack.c.h.b16 %v1574
    %v2030 = vunpack.c.l.b16 %v1575
    %v2031 = vunpack.c.h.b16 %v1575
    %v2032 = vpack.c.b16 %v2020, %v2016
    %v2033 = vpack.c.b16 %v2021, %v2017
    %v2034 = vpack.c.b16 %v2022, %v2018
    %v2035 = vpack.c.b16 %v2023, %v2019
    %v2036 = vpack.c.b16 %v2028, %v2024
    %v2037 = vpack.c.b16 %v2029, %v2025
    %v2038 = vpack.c.b16 %v2030, %v2026
    %v2039 = vpack.c.b16 %v2031, %v2027
    %v2056 = vunpack.c.l.b16 %v1664
    %v2057 = vunpack.c.h.b16 %v1664
    %v2058 = vunpack.c.l.b16 %v1665
    %v2059 = vunpack.c.h.b16 %v1665
    %v2060 = vunpack.c.l.b16 %v1666
    %v2061 = vunpack.c.h.b16 %v1666
    %v2062 = vunpack.c.l.b16 %v1667
    %v2063 = vunpack.c.h.b16 %v1667
    %v2064 = vunpack.c.l.b16 %v1668
    %v2065 = vunpack.c.h.b16 %v1668
    %v2066 = vunpack.c.l.b16 %v1669
    %v2067 = vunpack.c.h.b16 %v1669
    %v2068 = vunpack.c.l.b16 %v1670
    %v2069 = vunpack.c.h.b16 %v1670
    %v2070 = vunpack.c.l.b16 %v1671
    %v2071 = vunpack.c.h.b16 %v1671
    %v2072 = vpack.c.b16 %v2060, %v2056
    %v2073 = vpack.c.b16 %v2061, %v2057
    %v2074 = vpack.c.b16 %v2062, %v2058
    %v2075 = vpack.c.b16 %v2063, %v2059
    %v2076 = vpack.c.b16 %v2068, %v2064
    %v2077 = vpack.c.b16 %v2069, %v2065
    %v2078 = vpack.c.b16 %v2070, %v2066
    %v2079 = vpack.c.b16 %v2071, %v2067
    %v2096 = vunpack.c.l.b16 %v1760
    %v2097 = vunpack.c.h.b16 %v1760
    %v2098 = vunpack.c.l.b16 %v1761
    %v2099 = vunpack.c.h.b16 %v1761
    %v2100 = vunpack.c.l.b16 %v1762
    %v2101 = vunpack.c.h.b16 %v1762
    %v2102 = vunpack.c.l.b16 %v1763
    %v2103 = vunpack.c.h.b16 %v1763
    %v2104 = vunpack.c.l.b16 %v1764
    %v2105 = vunpack.c.h.b16 %v1764
    %v2106 = vunpack.c.l.b16 %v1765
    %v2107 = vunpack.c.h.b16 %v1765
    %v2108 = vunpack.c.l.b16 %v1766
    %v2109 = vunpack.c.h.b16 %v1766
    %v2110 = vunpack.c.l.b16 %v1767
    %v2111 = vunpack.c.h.b16 %v1767
    %v2112 = vpack.c.b16 %v2100, %v2096
    %v2113 = vpack.c.b16 %v2101, %v2097
    %v2114 = vpack.c.b16 %v2102, %v2098
    %v2115 = vpack.c.b16 %v2103, %v2099
    %v2116 = vpack.c.b16 %v2108, %v2104
    %v2117 = vpack.c.b16 %v2109, %v2105
    %v2118 = vpack.c.b16 %v2110, %v2106
    %v2119 = vpack.c.b16 %v2111, %v2107
    %v2128 = vld [vmem:[#allocation8] sm:$0xff]
    %v2129 = vld [vmem:[#allocation8 + $0x8] sm:$0xf]
    %v2130 = vld [vmem:[#allocation8 + $0xc] sm:$0xff]
    %v2131 = vld [vmem:[#allocation8 + $0x14] sm:$0xf]
    %v2132 = vld [vmem:[%s4] sm:$0xff]
    %v2133 = vld [vmem:[%s4 + $0x8] sm:$0xff]
    %2135 = vset.pattern.permute.xlu0 0
    %2136 = vperm.xlu0 %2135, %v2132
    %v2137 = vpop.permute.xlu0 %2136
    %2140 = vset.pattern.permute.xlu0 0
    %2141 = vperm.xlu0 %2140, %v2133
    %v2142 = vpop.permute.xlu0 %2141
    %v2148 = vunpack.c.l.b16 %v2128
    %v2149 = vunpack.c.h.b16 %v2128
    %v2150 = vunpack.c.l.b16 %v2129
    %v2151 = vunpack.c.l.b16 %v2130
    %v2152 = vunpack.c.h.b16 %v2130
    %v2153 = vunpack.c.l.b16 %v2131
    %v2154 = vpack.c.b16 %v2151, %v2148
    %v2155 = vpack.c.b16 %v2152, %v2149
    %v2156 = vpack.c.b16 %v2153, %v2150
    %vm2159 = vcmask 261120
    %v2161 = vsel %vm2159, %v2156, 0
    %2163 = vmatpush.bf16.msra.mxu0 %v1916
    %2164 = vmatpush.bf16.msra.mxu0 %v1912
    %2165 = vmatpush.bf16.msra.mxu0 %v1876
    %2166 = vmatpush.bf16.msra.mxu0 %v1872
    %2167 = vmatpush.bf16.msra.mxu0 %v1836
    %2168 = vmatpush.bf16.msra.mxu0 %v1832
    %2169 = vmatpush.bf16.msra.mxu0 %v1796
    %2170 = vmatpush.bf16.msra.mxu0 %v1792
    %2171 = vmatmul.bf16.gmra.mxu0 %v2154
    %v2172 = vpop.f32.mrf.mxu0
    %v2173 = vadd.f32 %v2137, %v2172
    %v2174 = vpop.f32.mrf.mxu0
    %v2175 = vadd.f32 %v2142, %v2174
    %2176 = vdwg.mxu0
    %2177 = vmatpush.bf16.msra.mxu0 %v2076
    %2178 = vmatpush.bf16.msra.mxu0 %v2072
    %2179 = vmatpush.bf16.msra.mxu0 %v2036
    %2180 = vmatpush.bf16.msra.mxu0 %v2032
    %2181 = vmatpush.bf16.msra.mxu0 %v1996
    %2182 = vmatpush.bf16.msra.mxu0 %v1992
    %2183 = vmatpush.bf16.msra.mxu0 %v1956
    %2184 = vmatpush.bf16.msra.mxu0 %v1952
    %2185 = vmatmul.bf16.gmra.mxu0 %v2155
    %v2186 = vpop.f32.mrf.mxu0
    %v2187 = vadd.f32 %v2173, %v2186
    %v2188 = vpop.f32.mrf.mxu0
    %v2189 = vadd.f32 %v2175, %v2188
    %2190 = vdwg.mxu0
    %2191 = vmatpush.bf16.msra.mxu0 0
    %2192 = vmatpush.bf16.msra.mxu0 0
    %2193 = vmatpush.bf16.msra.mxu0 0
    %2194 = vmatpush.bf16.msra.mxu0 0
    %2195 = vmatpush.bf16.msra.mxu0 0
    %2196 = vmatpush.bf16.msra.mxu0 0
    %2197 = vmatpush.bf16.msra.mxu0 %v2116
    %2198 = vmatpush.bf16.msra.mxu0 %v2112
    %2199 = vmatmul.bf16.gmra.mxu0 %v2161
    %v2200 = vpop.f32.mrf.mxu0
    %v2201 = vadd.f32 %v2187, %v2200
    %v2202 = vpop.f32.mrf.mxu0
    %v2203 = vadd.f32 %v2189, %v2202
    %2204 = vdwg.mxu0
    %2205 = vmatpush.bf16.msra.mxu0 %v1917
    %2206 = vmatpush.bf16.msra.mxu0 %v1913
    %2207 = vmatpush.bf16.msra.mxu0 %v1877
    %2208 = vmatpush.bf16.msra.mxu0 %v1873
    %2209 = vmatpush.bf16.msra.mxu0 %v1837
    %2210 = vmatpush.bf16.msra.mxu0 %v1833
    %2211 = vmatpush.bf16.msra.mxu0 %v1797
    %2212 = vmatpush.bf16.msra.mxu0 %v1793
    %2213 = vmatmul.bf16.gmra.mxu0 %v2154
    %v2214 = vpop.f32.mrf.mxu0
    %v2215 = vadd.f32 %v2137, %v2214
    %v2216 = vpop.f32.mrf.mxu0
    %v2217 = vadd.f32 %v2142, %v2216
    %2218 = vdwg.mxu0
    %2219 = vmatpush.bf16.msra.mxu0 %v2077
    %2220 = vmatpush.bf16.msra.mxu0 %v2073
    %2221 = vmatpush.bf16.msra.mxu0 %v2037
    %2222 = vmatpush.bf16.msra.mxu0 %v2033
    %2223 = vmatpush.bf16.msra.mxu0 %v1997
    %2224 = vmatpush.bf16.msra.mxu0 %v1993
    %2225 = vmatpush.bf16.msra.mxu0 %v1957
    %2226 = vmatpush.bf16.msra.mxu0 %v1953
    %2227 = vmatmul.bf16.gmra.mxu0 %v2155
    %v2228 = vpop.f32.mrf.mxu0
    %v2229 = vadd.f32 %v2215, %v2228
    %v2230 = vpop.f32.mrf.mxu0
    %v2231 = vadd.f32 %v2217, %v2230
    %2232 = vdwg.mxu0
    %2233 = vmatpush.bf16.msra.mxu0 0
    %2234 = vmatpush.bf16.msra.mxu0 0
    %2235 = vmatpush.bf16.msra.mxu0 0
    %2236 = vmatpush.bf16.msra.mxu0 0
    %2237 = vmatpush.bf16.msra.mxu0 0
    %2238 = vmatpush.bf16.msra.mxu0 0
    %2239 = vmatpush.bf16.msra.mxu0 %v2117
    %2240 = vmatpush.bf16.msra.mxu0 %v2113
    %2241 = vmatmul.bf16.gmra.mxu0 %v2161
    %v2242 = vpop.f32.mrf.mxu0
    %v2243 = vadd.f32 %v2229, %v2242
    %v2244 = vpop.f32.mrf.mxu0
    %v2245 = vadd.f32 %v2231, %v2244
    %2246 = vdwg.mxu0
    %2247 = vmatpush.bf16.msra.mxu0 %v1918
    %2248 = vmatpush.bf16.msra.mxu0 %v1914
    %2249 = vmatpush.bf16.msra.mxu0 %v1878
    %2250 = vmatpush.bf16.msra.mxu0 %v1874
    %2251 = vmatpush.bf16.msra.mxu0 %v1838
    %2252 = vmatpush.bf16.msra.mxu0 %v1834
    %2253 = vmatpush.bf16.msra.mxu0 %v1798
    %2254 = vmatpush.bf16.msra.mxu0 %v1794
    %2255 = vmatmul.bf16.gmra.mxu0 %v2154
    %v2256 = vpop.f32.mrf.mxu0
    %v2257 = vadd.f32 %v2137, %v2256
    %v2258 = vpop.f32.mrf.mxu0
    %v2259 = vadd.f32 %v2142, %v2258
    %2260 = vdwg.mxu0
    %2261 = vmatpush.bf16.msra.mxu0 %v2078
    %2262 = vmatpush.bf16.msra.mxu0 %v2074
    %2263 = vmatpush.bf16.msra.mxu0 %v2038
    %2264 = vmatpush.bf16.msra.mxu0 %v2034
    %2265 = vmatpush.bf16.msra.mxu0 %v1998
    %2266 = vmatpush.bf16.msra.mxu0 %v1994
    %2267 = vmatpush.bf16.msra.mxu0 %v1958
    %2268 = vmatpush.bf16.msra.mxu0 %v1954
    %2269 = vmatmul.bf16.gmra.mxu0 %v2155
    %v2270 = vpop.f32.mrf.mxu0
    %v2271 = vadd.f32 %v2257, %v2270
    %v2272 = vpop.f32.mrf.mxu0
    %v2273 = vadd.f32 %v2259, %v2272
    %2274 = vdwg.mxu0
    %2275 = vmatpush.bf16.msra.mxu0 0
    %2276 = vmatpush.bf16.msra.mxu0 0
    %2277 = vmatpush.bf16.msra.mxu0 0
    %2278 = vmatpush.bf16.msra.mxu0 0
    %2279 = vmatpush.bf16.msra.mxu0 0
    %2280 = vmatpush.bf16.msra.mxu0 0
    %2281 = vmatpush.bf16.msra.mxu0 %v2118
    %2282 = vmatpush.bf16.msra.mxu0 %v2114
    %2283 = vmatmul.bf16.gmra.mxu0 %v2161
    %v2284 = vpop.f32.mrf.mxu0
    %v2285 = vadd.f32 %v2271, %v2284
    %v2286 = vpop.f32.mrf.mxu0
    %v2287 = vadd.f32 %v2273, %v2286
    %2288 = vdwg.mxu0
    %2289 = vmatpush.bf16.msra.mxu0 %v1919
    %2290 = vmatpush.bf16.msra.mxu0 %v1915
    %2291 = vmatpush.bf16.msra.mxu0 %v1879
    %2292 = vmatpush.bf16.msra.mxu0 %v1875
    %2293 = vmatpush.bf16.msra.mxu0 %v1839
    %2294 = vmatpush.bf16.msra.mxu0 %v1835
    %2295 = vmatpush.bf16.msra.mxu0 %v1799
    %2296 = vmatpush.bf16.msra.mxu0 %v1795
    %2297 = vmatmul.bf16.gmra.mxu0 %v2154
    %v2298 = vpop.f32.mrf.mxu0
    %v2299 = vadd.f32 %v2137, %v2298
    %v2300 = vpop.f32.mrf.mxu0
    %v2301 = vadd.f32 %v2142, %v2300
    %2302 = vdwg.mxu0
    %2303 = vmatpush.bf16.msra.mxu0 %v2079
    %2304 = vmatpush.bf16.msra.mxu0 %v2075
    %2305 = vmatpush.bf16.msra.mxu0 %v2039
    %2306 = vmatpush.bf16.msra.mxu0 %v2035
    %2307 = vmatpush.bf16.msra.mxu0 %v1999
    %2308 = vmatpush.bf16.msra.mxu0 %v1995
    %2309 = vmatpush.bf16.msra.mxu0 %v1959
    %2310 = vmatpush.bf16.msra.mxu0 %v1955
    %2311 = vmatmul.bf16.gmra.mxu0 %v2155
    %v2312 = vpop.f32.mrf.mxu0
    %v2313 = vadd.f32 %v2299, %v2312
    %v2314 = vpop.f32.mrf.mxu0
    %v2315 = vadd.f32 %v2301, %v2314
    %2316 = vdwg.mxu0
    %2317 = vmatpush.bf16.msra.mxu0 0
    %2318 = vmatpush.bf16.msra.mxu0 0
    %2319 = vmatpush.bf16.msra.mxu0 0
    %2320 = vmatpush.bf16.msra.mxu0 0
    %2321 = vmatpush.bf16.msra.mxu0 0
    %2322 = vmatpush.bf16.msra.mxu0 0
    %2323 = vmatpush.bf16.msra.mxu0 %v2119
    %2324 = vmatpush.bf16.msra.mxu0 %v2115
    %2325 = vmatmul.bf16.gmra.mxu0 %v2161
    %v2326 = vpop.f32.mrf.mxu0
    %v2327 = vadd.f32 %v2313, %v2326
    %v2328 = vpop.f32.mrf.mxu0
    %v2329 = vadd.f32 %v2315, %v2328
    %2330 = vdwg.mxu0
    %2331 = vst [vmem:[#allocation10] sm:$0xff] %v2201
    %2332 = vst [vmem:[#allocation10 + $0x8] sm:$0xff] %v2243
    %2333 = vst [vmem:[#allocation10 + $0x10] sm:$0xff] %v2285
    %2334 = vst [vmem:[#allocation10 + $0x18] sm:$0xff] %v2327
    %2335 = vst [vmem:[#allocation10 + $0x20] sm:$0xff] %v2203
    %2336 = vst [vmem:[#allocation10 + $0x28] sm:$0xff] %v2245
    %2337 = vst [vmem:[#allocation10 + $0x30] sm:$0xff] %v2287
    %2338 = vst [vmem:[#allocation10 + $0x38] sm:$0xff] %v2329
    // Predicated region
    $region38: #{tpu_custom_call.1} parent=1 // pred_check
      _
    $region39: #{tpu_custom_call.1} parent=1 // pred_check_branch
      %2340 = sbr.rel (0) target = $region41
    $region40: #{tpu_custom_call.1} parent=1 // pred_region
      %2342 = vsyncadd [#allocation4], 0
      %s2343 = sshll.u32 [#allocation10], 4
      %s2344 = int_to_ptr.vmem [resolvable:$true] %s2343
      %s2345 = sshll.u32 %s5, 4
      %s2346 = int_to_ptr.hbm [resolvable:$true] %s2345
      %2351 = dma.vmem_to_hbm [thread:$0]  %s2344, 1024, %s2346, [#allocation4], 512, 512, 32
    $region41: #{tpu_custom_call.1} parent=1 // pred_fallthru
      _
    // Predicated region
    $region42: #{tpu_custom_call.1} parent=1 // pred_check
      _
    $region43: #{tpu_custom_call.1} parent=1 // pred_check_branch
      %2353 = sbr.rel (0) target = $region45
    $region44: #{tpu_custom_call.1} parent=1 // pred_region
      %2355 = dma.done [#allocation4], 1024
    $region45: #{tpu_custom_call.1} parent=1 // pred_fallthru
      _
    %2356 = vsyncpa [#allocation3], 1
    %2357 = vsyncpa [#allocation6], 1
    %2358 = vsyncpa [#allocation9], 1
    %2359 = vsyncpa [#allocation4], 1

</llo_original>
